<compile_context>
chip_gen: v7x
topology: tpu7x:2x2x1
jax: 0.10.0
libtpu: 0.0.40
codegen_flags: <defaults>
</compile_context>

<pallas_src>
import functools

import jax
import jax.numpy as jnp
from jax.experimental import pallas as pl
from jax.experimental.pallas import tpu as pltpu

HP = 128  # per-gate lane-padded width (one full lane group)


def lstm_kernel(x_ref, wih_ref, whh_ref, misc_ref, out_ref, *, seq_len, batch):
    """Whole LSTM recurrence + FC head in one kernel invocation.

    x_ref:    (B*T, D)     batch-major flattened input (row = b*T + t)
    wih_ref:  (D, 4*HP)    input weights, gate blocks [i|f|o|g], each lane-padded to HP
    whh_ref:  (HP, 4*HP)   recurrent weights, same block layout, rows >= H zeroed
    misc_ref: (3, 4*HP)    row0 = fused bias b_ih+b_hh (padded), row1[:HP] = fc weight,
                           row2[0,0] = fc bias
    out_ref:  (1, B, 1)    sigmoid(fc(hn) + 1e-6)
    """
    hp4 = wih_ref.shape[1]
    hp = hp4 // 4

    b_row = misc_ref[0:1, :]          # (1, 4*HP) fused LSTM bias
    wfc = misc_ref[1:2, 0:hp]         # (1, HP)   FC weight row (zero beyond H)
    bfc = misc_ref[2:3, 0:1]          # (1, 1)    FC bias

    # Hoisted input projection: one (B*T, D) x (D, 4*HP) MXU matmul, bias fused.
    gates_x = jnp.dot(x_ref[...], wih_ref[...],
                      preferred_element_type=jnp.float32) + b_row      # (B*T, 4*HP)

    whh = whh_ref[...]                # (HP, 4*HP), resident across the loop
    h = jnp.zeros((batch, hp), jnp.float32)
    c = jnp.zeros((batch, hp), jnp.float32)

    # Fully unrolled static loop (T is small); only the skinny recurrent matmul is serial.
    for t in range(seq_len):
        # Gather this timestep's batch rows from the batch-major projection (static offsets).
        rows = [gates_x[b * seq_len + t:b * seq_len + t + 1, :] for b in range(batch)]
        gxt = rows[0] if batch == 1 else jnp.concatenate(rows, axis=0)  # (B, 4*HP)

        gates = gxt + jnp.dot(h, whh, preferred_element_type=jnp.float32)  # (B, 4*HP)
        # Lane-aligned blocks: one sigmoid over [i|f|o] (3*HP lanes), one tanh over [g].
        sig = jax.nn.sigmoid(gates[:, :3 * hp])
        g_g = jnp.tanh(gates[:, 3 * hp:])
        i_g = sig[:, 0:hp]
        f_g = sig[:, hp:2 * hp]
        o_g = sig[:, 2 * hp:3 * hp]
        c = f_g * c + i_g * g_g
        h = o_g * jnp.tanh(c)

    # Final Linear (output_dim = 1) as VPU multiply + cross-lane reduce (no N=1 MXU op).
    logits = jnp.sum(h * wfc, axis=1, keepdims=True) + bfc              # (B, 1)
    out_ref[0] = jax.nn.sigmoid(logits + 1e-6)


def prepare_params(w_ih, w_hh, b_ih, b_hh, w_fc, b_fc):
    """One-time (off the per-call critical path) weight repack.

    PyTorch gate order [i, f, g, o] -> kernel order [i, f, o, g]; each gate is given its
    own HP(=128)-lane block, transposed to (K, N) layout, and the two LSTM biases are fused.
    """
    hidden = w_hh.shape[1]
    in_dim = w_ih.shape[1]
    order = (0, 1, 3, 2)  # torch [i,f,g,o] -> kernel [i,f,o,g]
    b_sum = (b_ih + b_hh).astype(jnp.float32)

    wih_p = jnp.zeros((in_dim, 4 * HP), jnp.float32)
    whh_p = jnp.zeros((HP, 4 * HP), jnp.float32)
    b_p = jnp.zeros((4 * HP,), jnp.float32)
    for slot, k in enumerate(order):
        blk = slice(k * hidden, (k + 1) * hidden)
        dst = slice(slot * HP, slot * HP + hidden)
        wih_p = wih_p.at[:, dst].set(w_ih[blk].T.astype(jnp.float32))
        whh_p = whh_p.at[:hidden, dst].set(w_hh[blk].T.astype(jnp.float32))
        b_p = b_p.at[dst].set(b_sum[blk])

    misc = jnp.zeros((3, 4 * HP), jnp.float32)
    misc = misc.at[0, :].set(b_p)
    misc = misc.at[1, :hidden].set(w_fc.reshape(hidden).astype(jnp.float32))
    misc = misc.at[2, 0].set(b_fc.reshape(()).astype(jnp.float32))
    return wih_p, whh_p, misc


@jax.jit
def lstm_model_forward(x_btd, wih_p, whh_p, misc):
    """x_btd: (B, T, D) float32. Returns (1, B, 1), matching torch.sigmoid(fc(hn)+1e-6)."""
    B, T, D = x_btd.shape
    x2d = x_btd.reshape(B * T, D).astype(jnp.float32)   # contiguous -> free bitcast, no copy

    # All-in-VMEM design is only valid for small shapes (v7x VMEM is 64 MiB).
    vmem_bytes = 4 * (B * T * D + B * T * 4 * HP + D * 4 * HP + HP * 4 * HP + 3 * 4 * HP)
    # TODO(synk): for large T/B/D, tile the hoisted input projection over T with a
    # BlockSpec-pipelined grid (time axis "arbitrary", h/c in VMEM scratch).
    assert vmem_bytes < (8 << 20), "shape too large for the single-invocation VMEM kernel"

    out = pl.pallas_call(
        functools.partial(lstm_kernel, seq_len=T, batch=B),
        out_shape=jax.ShapeDtypeStruct((1, B, 1), jnp.float32),
        in_specs=[pl.BlockSpec(memory_space=pltpu.MemorySpace.VMEM)] * 4,
        out_specs=pl.BlockSpec(memory_space=pltpu.MemorySpace.VMEM),
    )(x2d, wih_p, whh_p, misc)
    return out


def reference_forward(x_btd, w_ih, w_hh, b_ih, b_hh, w_fc, b_fc):
    """Pure-JAX reference of the PyTorch forward (sanity check)."""
    B, T, D = x_btd.shape
    H = w_hh.shape[1]
    h = jnp.zeros((B, H), jnp.float32)
    c = jnp.zeros((B, H), jnp.float32)
    for t in range(T):
        gates = x_btd[:, t, :] @ w_ih.T + b_ih + h @ w_hh.T + b_hh
        i = jax.nn.sigmoid(gates[:, 0:H])
        f = jax.nn.sigmoid(gates[:, H:2 * H])
        g = jnp.tanh(gates[:, 2 * H:3 * H])
        o = jax.nn.sigmoid(gates[:, 3 * H:4 * H])
        c = f * c + i * g
        h = o * jnp.tanh(c)
    hn = h[None, :, :]                                   # (1, B, H)
    return jax.nn.sigmoid(hn @ w_fc.T + b_fc + 1e-6)     # (1, B, 1)


if __name__ == "__main__":
    # Module hyperparameters from the PyTorch script.
    input_dim, hidden_dim, layer_dim, output_dim = 100, 10, 1, 1
    B, T = 2, 8

    key = jax.random.PRNGKey(0)
    ks = jax.random.split(key, 7)
    scale = 1.0 / jnp.sqrt(hidden_dim)
    x = jax.random.normal(ks[0], (B, T, input_dim), jnp.float32)
    w_ih = jax.random.uniform(ks[1], (4 * hidden_dim, input_dim), jnp.float32, -scale, scale)
    w_hh = jax.random.uniform(ks[2], (4 * hidden_dim, hidden_dim), jnp.float32, -scale, scale)
    b_ih = jax.random.uniform(ks[3], (4 * hidden_dim,), jnp.float32, -scale, scale)
    b_hh = jax.random.uniform(ks[4], (4 * hidden_dim,), jnp.float32, -scale, scale)
    w_fc = jax.random.uniform(ks[5], (output_dim, hidden_dim), jnp.float32, -scale, scale)
    b_fc = jax.random.uniform(ks[6], (output_dim,), jnp.float32, -scale, scale)

    # One-time weight repack (off the per-call path).
    wih_p, whh_p, misc = prepare_params(w_ih, w_hh, b_ih, b_hh, w_fc, b_fc)
    wih_p, whh_p, misc = jax.block_until_ready((wih_p, whh_p, misc))

    out = lstm_model_forward(x, wih_p, whh_p, misc)
    out = jax.block_until_ready(out)

    ref = reference_forward(x, w_ih, w_hh, b_ih, b_hh, w_fc, b_fc)
    assert out.shape == (layer_dim, B, output_dim)
    assert jnp.allclose(out, ref, atol=1e-5, rtol=1e-5)

    print("KERNEL_OK")
</pallas_src>

<mosaic_0001>
module attributes {stable_mosaic.version = 11 : i64} {
  func.func @lstm_kernel(%arg0: memref<16x100xf32, #tpu.memory_space<vmem>>, %arg1: memref<100x512xf32, #tpu.memory_space<vmem>>, %arg2: memref<128x512xf32, #tpu.memory_space<vmem>>, %arg3: memref<3x512xf32, #tpu.memory_space<vmem>>, %arg4: memref<1x2x1xf32, #tpu.memory_space<vmem>>) attributes {dimension_semantics = [], scalar_prefetch = 0 : i64, scratch_operands = 0 : i64, tpu.core_type = #tpu.core_type<tc>} {
    %c0 = arith.constant 0 : index
    %c0_0 = arith.constant 0 : index
    %0 = vector.load %arg3[%c0, %c0_0] : memref<3x512xf32, #tpu.memory_space<vmem>>, vector<1x512xf32>
    %c1 = arith.constant 1 : index
    %c0_1 = arith.constant 0 : index
    %1 = vector.load %arg3[%c1, %c0_1] : memref<3x512xf32, #tpu.memory_space<vmem>>, vector<1x128xf32>
    %c2 = arith.constant 2 : index
    %c0_2 = arith.constant 0 : index
    %2 = vector.load %arg3[%c2, %c0_2] : memref<3x512xf32, #tpu.memory_space<vmem>>, vector<1x1xf32>
    %c0_3 = arith.constant 0 : index
    %c0_4 = arith.constant 0 : index
    %3 = vector.load %arg0[%c0_3, %c0_4] : memref<16x100xf32, #tpu.memory_space<vmem>>, vector<16x100xf32>
    %c0_5 = arith.constant 0 : index
    %c0_6 = arith.constant 0 : index
    %4 = vector.load %arg1[%c0_5, %c0_6] : memref<100x512xf32, #tpu.memory_space<vmem>>, vector<100x512xf32>
    %cst = arith.constant dense<0.000000e+00> : vector<16x512xf32>
    %5 = tpu.matmul %3, %4, %cst {dimension_numbers = #tpu.dot_dimension_numbers<[1], [0], [0], [1], [0, 0, 1, 1], [], []>} : vector<16x100xf32>, vector<100x512xf32>, vector<16x512xf32> -> vector<16x512xf32>
    %6 = vector.broadcast %0 : vector<1x512xf32> to vector<16x512xf32>
    %7 = arith.addf %5, %6 : vector<16x512xf32>
    %c0_7 = arith.constant 0 : index
    %c0_8 = arith.constant 0 : index
    %8 = vector.load %arg2[%c0_7, %c0_8] : memref<128x512xf32, #tpu.memory_space<vmem>>, vector<128x512xf32>
    %cst_9 = arith.constant 0.000000e+00 : f32
    %9 = vector.broadcast %cst_9 : f32 to vector<2x128xf32>
    %cst_10 = arith.constant 0.000000e+00 : f32
    %10 = vector.broadcast %cst_10 : f32 to vector<2x128xf32>
    %11 = vector.extract_strided_slice %7 {offsets = [0, 0], sizes = [1, 512], strides = [1, 1]} : vector<16x512xf32> to vector<1x512xf32>
    %12 = vector.extract_strided_slice %7 {offsets = [8, 0], sizes = [1, 512], strides = [1, 1]} : vector<16x512xf32> to vector<1x512xf32>
    %13 = tpu.concatenate %11, %12 in 0 : vector<1x512xf32>, vector<1x512xf32> -> vector<2x512xf32>
    %cst_11 = arith.constant dense<0.000000e+00> : vector<2x512xf32>
    %14 = tpu.matmul %9, %8, %cst_11 {dimension_numbers = #tpu.dot_dimension_numbers<[1], [0], [0], [1], [0, 0, 1, 1], [], []>} : vector<2x128xf32>, vector<128x512xf32>, vector<2x512xf32> -> vector<2x512xf32>
    %15 = arith.addf %13, %14 : vector<2x512xf32>
    %16 = vector.extract_strided_slice %15 {offsets = [0, 0], sizes = [2, 384], strides = [1, 1]} : vector<2x512xf32> to vector<2x384xf32>
    %17 = arith.negf %16 : vector<2x384xf32>
    %18 = math.exp %17 : vector<2x384xf32>
    %cst_12 = arith.constant 1.000000e+00 : f32
    %19 = vector.broadcast %cst_12 : f32 to vector<2x384xf32>
    %20 = arith.addf %19, %18 : vector<2x384xf32>
    %21 = arith.divf %19, %20 : vector<2x384xf32>
    %22 = vector.extract_strided_slice %15 {offsets = [0, 384], sizes = [2, 128], strides = [1, 1]} : vector<2x512xf32> to vector<2x128xf32>
    %23 = math.tanh %22 : vector<2x128xf32>
    %24 = vector.extract_strided_slice %21 {offsets = [0, 0], sizes = [2, 128], strides = [1, 1]} : vector<2x384xf32> to vector<2x128xf32>
    %25 = vector.extract_strided_slice %21 {offsets = [0, 128], sizes = [2, 128], strides = [1, 1]} : vector<2x384xf32> to vector<2x128xf32>
    %26 = vector.extract_strided_slice %21 {offsets = [0, 256], sizes = [2, 128], strides = [1, 1]} : vector<2x384xf32> to vector<2x128xf32>
    %27 = arith.mulf %25, %10 : vector<2x128xf32>
    %28 = arith.mulf %24, %23 : vector<2x128xf32>
    %29 = arith.addf %27, %28 : vector<2x128xf32>
    %30 = math.tanh %29 : vector<2x128xf32>
    %31 = arith.mulf %26, %30 : vector<2x128xf32>
    %32 = vector.extract_strided_slice %7 {offsets = [1, 0], sizes = [1, 512], strides = [1, 1]} : vector<16x512xf32> to vector<1x512xf32>
    %33 = vector.extract_strided_slice %7 {offsets = [9, 0], sizes = [1, 512], strides = [1, 1]} : vector<16x512xf32> to vector<1x512xf32>
    %34 = tpu.concatenate %32, %33 in 0 : vector<1x512xf32>, vector<1x512xf32> -> vector<2x512xf32>
    %cst_13 = arith.constant dense<0.000000e+00> : vector<2x512xf32>
    %35 = tpu.matmul %31, %8, %cst_13 {dimension_numbers = #tpu.dot_dimension_numbers<[1], [0], [0], [1], [0, 0, 1, 1], [], []>} : vector<2x128xf32>, vector<128x512xf32>, vector<2x512xf32> -> vector<2x512xf32>
    %36 = arith.addf %34, %35 : vector<2x512xf32>
    %37 = vector.extract_strided_slice %36 {offsets = [0, 0], sizes = [2, 384], strides = [1, 1]} : vector<2x512xf32> to vector<2x384xf32>
    %38 = arith.negf %37 : vector<2x384xf32>
    %39 = math.exp %38 : vector<2x384xf32>
    %cst_14 = arith.constant 1.000000e+00 : f32
    %40 = vector.broadcast %cst_14 : f32 to vector<2x384xf32>
    %41 = arith.addf %40, %39 : vector<2x384xf32>
    %42 = arith.divf %40, %41 : vector<2x384xf32>
    %43 = vector.extract_strided_slice %36 {offsets = [0, 384], sizes = [2, 128], strides = [1, 1]} : vector<2x512xf32> to vector<2x128xf32>
    %44 = math.tanh %43 : vector<2x128xf32>
    %45 = vector.extract_strided_slice %42 {offsets = [0, 0], sizes = [2, 128], strides = [1, 1]} : vector<2x384xf32> to vector<2x128xf32>
    %46 = vector.extract_strided_slice %42 {offsets = [0, 128], sizes = [2, 128], strides = [1, 1]} : vector<2x384xf32> to vector<2x128xf32>
    %47 = vector.extract_strided_slice %42 {offsets = [0, 256], sizes = [2, 128], strides = [1, 1]} : vector<2x384xf32> to vector<2x128xf32>
    %48 = arith.mulf %46, %29 : vector<2x128xf32>
    %49 = arith.mulf %45, %44 : vector<2x128xf32>
    %50 = arith.addf %48, %49 : vector<2x128xf32>
    %51 = math.tanh %50 : vector<2x128xf32>
    %52 = arith.mulf %47, %51 : vector<2x128xf32>
    %53 = vector.extract_strided_slice %7 {offsets = [2, 0], sizes = [1, 512], strides = [1, 1]} : vector<16x512xf32> to vector<1x512xf32>
    %54 = vector.extract_strided_slice %7 {offsets = [10, 0], sizes = [1, 512], strides = [1, 1]} : vector<16x512xf32> to vector<1x512xf32>
    %55 = tpu.concatenate %53, %54 in 0 : vector<1x512xf32>, vector<1x512xf32> -> vector<2x512xf32>
    %cst_15 = arith.constant dense<0.000000e+00> : vector<2x512xf32>
    %56 = tpu.matmul %52, %8, %cst_15 {dimension_numbers = #tpu.dot_dimension_numbers<[1], [0], [0], [1], [0, 0, 1, 1], [], []>} : vector<2x128xf32>, vector<128x512xf32>, vector<2x512xf32> -> vector<2x512xf32>
    %57 = arith.addf %55, %56 : vector<2x512xf32>
    %58 = vector.extract_strided_slice %57 {offsets = [0, 0], sizes = [2, 384], strides = [1, 1]} : vector<2x512xf32> to vector<2x384xf32>
    %59 = arith.negf %58 : vector<2x384xf32>
    %60 = math.exp %59 : vector<2x384xf32>
    %cst_16 = arith.constant 1.000000e+00 : f32
    %61 = vector.broadcast %cst_16 : f32 to vector<2x384xf32>
    %62 = arith.addf %61, %60 : vector<2x384xf32>
    %63 = arith.divf %61, %62 : vector<2x384xf32>
    %64 = vector.extract_strided_slice %57 {offsets = [0, 384], sizes = [2, 128], strides = [1, 1]} : vector<2x512xf32> to vector<2x128xf32>
    %65 = math.tanh %64 : vector<2x128xf32>
    %66 = vector.extract_strided_slice %63 {offsets = [0, 0], sizes = [2, 128], strides = [1, 1]} : vector<2x384xf32> to vector<2x128xf32>
    %67 = vector.extract_strided_slice %63 {offsets = [0, 128], sizes = [2, 128], strides = [1, 1]} : vector<2x384xf32> to vector<2x128xf32>
    %68 = vector.extract_strided_slice %63 {offsets = [0, 256], sizes = [2, 128], strides = [1, 1]} : vector<2x384xf32> to vector<2x128xf32>
    %69 = arith.mulf %67, %50 : vector<2x128xf32>
    %70 = arith.mulf %66, %65 : vector<2x128xf32>
    %71 = arith.addf %69, %70 : vector<2x128xf32>
    %72 = math.tanh %71 : vector<2x128xf32>
    %73 = arith.mulf %68, %72 : vector<2x128xf32>
    %74 = vector.extract_strided_slice %7 {offsets = [3, 0], sizes = [1, 512], strides = [1, 1]} : vector<16x512xf32> to vector<1x512xf32>
    %75 = vector.extract_strided_slice %7 {offsets = [11, 0], sizes = [1, 512], strides = [1, 1]} : vector<16x512xf32> to vector<1x512xf32>
    %76 = tpu.concatenate %74, %75 in 0 : vector<1x512xf32>, vector<1x512xf32> -> vector<2x512xf32>
    %cst_17 = arith.constant dense<0.000000e+00> : vector<2x512xf32>
    %77 = tpu.matmul %73, %8, %cst_17 {dimension_numbers = #tpu.dot_dimension_numbers<[1], [0], [0], [1], [0, 0, 1, 1], [], []>} : vector<2x128xf32>, vector<128x512xf32>, vector<2x512xf32> -> vector<2x512xf32>
    %78 = arith.addf %76, %77 : vector<2x512xf32>
    %79 = vector.extract_strided_slice %78 {offsets = [0, 0], sizes = [2, 384], strides = [1, 1]} : vector<2x512xf32> to vector<2x384xf32>
    %80 = arith.negf %79 : vector<2x384xf32>
    %81 = math.exp %80 : vector<2x384xf32>
    %cst_18 = arith.constant 1.000000e+00 : f32
    %82 = vector.broadcast %cst_18 : f32 to vector<2x384xf32>
    %83 = arith.addf %82, %81 : vector<2x384xf32>
    %84 = arith.divf %82, %83 : vector<2x384xf32>
    %85 = vector.extract_strided_slice %78 {offsets = [0, 384], sizes = [2, 128], strides = [1, 1]} : vector<2x512xf32> to vector<2x128xf32>
    %86 = math.tanh %85 : vector<2x128xf32>
    %87 = vector.extract_strided_slice %84 {offsets = [0, 0], sizes = [2, 128], strides = [1, 1]} : vector<2x384xf32> to vector<2x128xf32>
    %88 = vector.extract_strided_slice %84 {offsets = [0, 128], sizes = [2, 128], strides = [1, 1]} : vector<2x384xf32> to vector<2x128xf32>
    %89 = vector.extract_strided_slice %84 {offsets = [0, 256], sizes = [2, 128], strides = [1, 1]} : vector<2x384xf32> to vector<2x128xf32>
    %90 = arith.mulf %88, %71 : vector<2x128xf32>
    %91 = arith.mulf %87, %86 : vector<2x128xf32>
    %92 = arith.addf %90, %91 : vector<2x128xf32>
    %93 = math.tanh %92 : vector<2x128xf32>
    %94 = arith.mulf %89, %93 : vector<2x128xf32>
    %95 = vector.extract_strided_slice %7 {offsets = [4, 0], sizes = [1, 512], strides = [1, 1]} : vector<16x512xf32> to vector<1x512xf32>
    %96 = vector.extract_strided_slice %7 {offsets = [12, 0], sizes = [1, 512], strides = [1, 1]} : vector<16x512xf32> to vector<1x512xf32>
    %97 = tpu.concatenate %95, %96 in 0 : vector<1x512xf32>, vector<1x512xf32> -> vector<2x512xf32>
    %cst_19 = arith.constant dense<0.000000e+00> : vector<2x512xf32>
    %98 = tpu.matmul %94, %8, %cst_19 {dimension_numbers = #tpu.dot_dimension_numbers<[1], [0], [0], [1], [0, 0, 1, 1], [], []>} : vector<2x128xf32>, vector<128x512xf32>, vector<2x512xf32> -> vector<2x512xf32>
    %99 = arith.addf %97, %98 : vector<2x512xf32>
    %100 = vector.extract_strided_slice %99 {offsets = [0, 0], sizes = [2, 384], strides = [1, 1]} : vector<2x512xf32> to vector<2x384xf32>
    %101 = arith.negf %100 : vector<2x384xf32>
    %102 = math.exp %101 : vector<2x384xf32>
    %cst_20 = arith.constant 1.000000e+00 : f32
    %103 = vector.broadcast %cst_20 : f32 to vector<2x384xf32>
    %104 = arith.addf %103, %102 : vector<2x384xf32>
    %105 = arith.divf %103, %104 : vector<2x384xf32>
    %106 = vector.extract_strided_slice %99 {offsets = [0, 384], sizes = [2, 128], strides = [1, 1]} : vector<2x512xf32> to vector<2x128xf32>
    %107 = math.tanh %106 : vector<2x128xf32>
    %108 = vector.extract_strided_slice %105 {offsets = [0, 0], sizes = [2, 128], strides = [1, 1]} : vector<2x384xf32> to vector<2x128xf32>
    %109 = vector.extract_strided_slice %105 {offsets = [0, 128], sizes = [2, 128], strides = [1, 1]} : vector<2x384xf32> to vector<2x128xf32>
    %110 = vector.extract_strided_slice %105 {offsets = [0, 256], sizes = [2, 128], strides = [1, 1]} : vector<2x384xf32> to vector<2x128xf32>
    %111 = arith.mulf %109, %92 : vector<2x128xf32>
    %112 = arith.mulf %108, %107 : vector<2x128xf32>
    %113 = arith.addf %111, %112 : vector<2x128xf32>
    %114 = math.tanh %113 : vector<2x128xf32>
    %115 = arith.mulf %110, %114 : vector<2x128xf32>
    %116 = vector.extract_strided_slice %7 {offsets = [5, 0], sizes = [1, 512], strides = [1, 1]} : vector<16x512xf32> to vector<1x512xf32>
    %117 = vector.extract_strided_slice %7 {offsets = [13, 0], sizes = [1, 512], strides = [1, 1]} : vector<16x512xf32> to vector<1x512xf32>
    %118 = tpu.concatenate %116, %117 in 0 : vector<1x512xf32>, vector<1x512xf32> -> vector<2x512xf32>
    %cst_21 = arith.constant dense<0.000000e+00> : vector<2x512xf32>
    %119 = tpu.matmul %115, %8, %cst_21 {dimension_numbers = #tpu.dot_dimension_numbers<[1], [0], [0], [1], [0, 0, 1, 1], [], []>} : vector<2x128xf32>, vector<128x512xf32>, vector<2x512xf32> -> vector<2x512xf32>
    %120 = arith.addf %118, %119 : vector<2x512xf32>
    %121 = vector.extract_strided_slice %120 {offsets = [0, 0], sizes = [2, 384], strides = [1, 1]} : vector<2x512xf32> to vector<2x384xf32>
    %122 = arith.negf %121 : vector<2x384xf32>
    %123 = math.exp %122 : vector<2x384xf32>
    %cst_22 = arith.constant 1.000000e+00 : f32
    %124 = vector.broadcast %cst_22 : f32 to vector<2x384xf32>
    %125 = arith.addf %124, %123 : vector<2x384xf32>
    %126 = arith.divf %124, %125 : vector<2x384xf32>
    %127 = vector.extract_strided_slice %120 {offsets = [0, 384], sizes = [2, 128], strides = [1, 1]} : vector<2x512xf32> to vector<2x128xf32>
    %128 = math.tanh %127 : vector<2x128xf32>
    %129 = vector.extract_strided_slice %126 {offsets = [0, 0], sizes = [2, 128], strides = [1, 1]} : vector<2x384xf32> to vector<2x128xf32>
    %130 = vector.extract_strided_slice %126 {offsets = [0, 128], sizes = [2, 128], strides = [1, 1]} : vector<2x384xf32> to vector<2x128xf32>
    %131 = vector.extract_strided_slice %126 {offsets = [0, 256], sizes = [2, 128], strides = [1, 1]} : vector<2x384xf32> to vector<2x128xf32>
    %132 = arith.mulf %130, %113 : vector<2x128xf32>
    %133 = arith.mulf %129, %128 : vector<2x128xf32>
    %134 = arith.addf %132, %133 : vector<2x128xf32>
    %135 = math.tanh %134 : vector<2x128xf32>
    %136 = arith.mulf %131, %135 : vector<2x128xf32>
    %137 = vector.extract_strided_slice %7 {offsets = [6, 0], sizes = [1, 512], strides = [1, 1]} : vector<16x512xf32> to vector<1x512xf32>
    %138 = vector.extract_strided_slice %7 {offsets = [14, 0], sizes = [1, 512], strides = [1, 1]} : vector<16x512xf32> to vector<1x512xf32>
    %139 = tpu.concatenate %137, %138 in 0 : vector<1x512xf32>, vector<1x512xf32> -> vector<2x512xf32>
    %cst_23 = arith.constant dense<0.000000e+00> : vector<2x512xf32>
    %140 = tpu.matmul %136, %8, %cst_23 {dimension_numbers = #tpu.dot_dimension_numbers<[1], [0], [0], [1], [0, 0, 1, 1], [], []>} : vector<2x128xf32>, vector<128x512xf32>, vector<2x512xf32> -> vector<2x512xf32>
    %141 = arith.addf %139, %140 : vector<2x512xf32>
    %142 = vector.extract_strided_slice %141 {offsets = [0, 0], sizes = [2, 384], strides = [1, 1]} : vector<2x512xf32> to vector<2x384xf32>
    %143 = arith.negf %142 : vector<2x384xf32>
    %144 = math.exp %143 : vector<2x384xf32>
    %cst_24 = arith.constant 1.000000e+00 : f32
    %145 = vector.broadcast %cst_24 : f32 to vector<2x384xf32>
    %146 = arith.addf %145, %144 : vector<2x384xf32>
    %147 = arith.divf %145, %146 : vector<2x384xf32>
    %148 = vector.extract_strided_slice %141 {offsets = [0, 384], sizes = [2, 128], strides = [1, 1]} : vector<2x512xf32> to vector<2x128xf32>
    %149 = math.tanh %148 : vector<2x128xf32>
    %150 = vector.extract_strided_slice %147 {offsets = [0, 0], sizes = [2, 128], strides = [1, 1]} : vector<2x384xf32> to vector<2x128xf32>
    %151 = vector.extract_strided_slice %147 {offsets = [0, 128], sizes = [2, 128], strides = [1, 1]} : vector<2x384xf32> to vector<2x128xf32>
    %152 = vector.extract_strided_slice %147 {offsets = [0, 256], sizes = [2, 128], strides = [1, 1]} : vector<2x384xf32> to vector<2x128xf32>
    %153 = arith.mulf %151, %134 : vector<2x128xf32>
    %154 = arith.mulf %150, %149 : vector<2x128xf32>
    %155 = arith.addf %153, %154 : vector<2x128xf32>
    %156 = math.tanh %155 : vector<2x128xf32>
    %157 = arith.mulf %152, %156 : vector<2x128xf32>
    %158 = vector.extract_strided_slice %7 {offsets = [7, 0], sizes = [1, 512], strides = [1, 1]} : vector<16x512xf32> to vector<1x512xf32>
    %159 = vector.extract_strided_slice %7 {offsets = [15, 0], sizes = [1, 512], strides = [1, 1]} : vector<16x512xf32> to vector<1x512xf32>
    %160 = tpu.concatenate %158, %159 in 0 : vector<1x512xf32>, vector<1x512xf32> -> vector<2x512xf32>
    %cst_25 = arith.constant dense<0.000000e+00> : vector<2x512xf32>
    %161 = tpu.matmul %157, %8, %cst_25 {dimension_numbers = #tpu.dot_dimension_numbers<[1], [0], [0], [1], [0, 0, 1, 1], [], []>} : vector<2x128xf32>, vector<128x512xf32>, vector<2x512xf32> -> vector<2x512xf32>
    %162 = arith.addf %160, %161 : vector<2x512xf32>
    %163 = vector.extract_strided_slice %162 {offsets = [0, 0], sizes = [2, 384], strides = [1, 1]} : vector<2x512xf32> to vector<2x384xf32>
    %164 = arith.negf %163 : vector<2x384xf32>
    %165 = math.exp %164 : vector<2x384xf32>
    %cst_26 = arith.constant 1.000000e+00 : f32
    %166 = vector.broadcast %cst_26 : f32 to vector<2x384xf32>
    %167 = arith.addf %166, %165 : vector<2x384xf32>
    %168 = arith.divf %166, %167 : vector<2x384xf32>
    %169 = vector.extract_strided_slice %162 {offsets = [0, 384], sizes = [2, 128], strides = [1, 1]} : vector<2x512xf32> to vector<2x128xf32>
    %170 = math.tanh %169 : vector<2x128xf32>
    %171 = vector.extract_strided_slice %168 {offsets = [0, 0], sizes = [2, 128], strides = [1, 1]} : vector<2x384xf32> to vector<2x128xf32>
    %172 = vector.extract_strided_slice %168 {offsets = [0, 128], sizes = [2, 128], strides = [1, 1]} : vector<2x384xf32> to vector<2x128xf32>
    %173 = vector.extract_strided_slice %168 {offsets = [0, 256], sizes = [2, 128], strides = [1, 1]} : vector<2x384xf32> to vector<2x128xf32>
    %174 = arith.mulf %172, %155 : vector<2x128xf32>
    %175 = arith.mulf %171, %170 : vector<2x128xf32>
    %176 = arith.addf %174, %175 : vector<2x128xf32>
    %177 = math.tanh %176 : vector<2x128xf32>
    %178 = arith.mulf %173, %177 : vector<2x128xf32>
    %179 = vector.broadcast %1 : vector<1x128xf32> to vector<2x128xf32>
    %180 = arith.mulf %178, %179 : vector<2x128xf32>
    %cst_27 = arith.constant dense<0.000000e+00> : vector<2xf32>
    %181 = vector.multi_reduction <add>, %180, %cst_27 [1] : vector<2x128xf32> to vector<2xf32>
    %182 = vector.shape_cast %181 : vector<2xf32> to vector<2x1xf32>
    %183 = vector.broadcast %2 : vector<1x1xf32> to vector<2x1xf32>
    %184 = arith.addf %182, %183 : vector<2x1xf32>
    %cst_28 = arith.constant 9.99999997E-7 : f32
    %185 = vector.broadcast %cst_28 : f32 to vector<2x1xf32>
    %186 = arith.addf %184, %185 : vector<2x1xf32>
    %187 = arith.negf %186 : vector<2x1xf32>
    %188 = math.exp %187 : vector<2x1xf32>
    %cst_29 = arith.constant 1.000000e+00 : f32
    %189 = vector.broadcast %cst_29 : f32 to vector<2x1xf32>
    %190 = arith.addf %189, %188 : vector<2x1xf32>
    %191 = arith.divf %189, %190 : vector<2x1xf32>
    %c0_30 = arith.constant 0 : index
    %c0_31 = arith.constant 0 : index
    %c0_32 = arith.constant 0 : index
    %192 = vector.load %arg4[%c0_30, %c0_31, %c0_32] : memref<1x2x1xf32, #tpu.memory_space<vmem>>, vector<1x2x1xf32>
    %193 = vector.shape_cast %192 : vector<1x2x1xf32> to vector<2x1xf32>
    %194 = vector.shape_cast %191 : vector<2x1xf32> to vector<1x2x1xf32>
    tpu.vector_store %arg4[%c0_30, %c0_31, %c0_32], %194 {strides = array<i32>} : memref<1x2x1xf32, #tpu.memory_space<vmem>>, vector<1x2x1xf32>,
    return
  }
}

</mosaic_0001>

<llo_original>
// kernel: lstm_model_forward.1
$region0: #{lstm_model_forward.1}
  #allocation0 [shape = 'u32[]', space=smem, size = 0x4, offset = 0x4, fixed_abs, tag = 'smem constant byte address 0x4 - core index']
  #allocation1 [shape = 'u32[144,128]{1,0:T(1,128)}', space=vmem, size = 0x12000, scoped, tag = 'internal scratch']
  %s0 = inlined_call_operand.hbm [shape: f32[16,100], index: 0, kind: input, shape index: {}]
  %s1 = inlined_call_operand.hbm [shape: f32[100,512], index: 1, kind: input, shape index: {}]
  %s2 = inlined_call_operand.hbm [shape: f32[128,512], index: 2, kind: input, shape index: {}]
  %s3 = inlined_call_operand.hbm [shape: f32[3,512], index: 3, kind: input, shape index: {}]
  %s4 = inlined_call_operand.vmem [shape: f32[1,2,1], index: 4, kind: output, shape index: {}]
  %s5 = sld [smem:[#allocation0]]
  $region42: #{lstm_model_forward.1} parent=0
    _
  %s7 = ssub.s32 1, %s5
  %s8 = scalar_select 0, %s7, %s5
  $region1: #{lstm_model_forward.1} parent=0
    #allocation2 [shape = 'u8[8192]{0}', space=vmem, size = 0x2000, scoped, tag = 'input window, operand 0, single buffered']
    #allocation3 [shape = 's32[1]{0}', space=sflag, size = 0x4, scoped, tag = 'scoped memory for lstm_model_forward.1']
    #allocation4 [shape = 'u8[212992]{0}', space=vmem, size = 0x34000, scoped, tag = 'input window, operand 1, single buffered']
    #allocation5 [shape = 's32[1]{0}', space=sflag, size = 0x4, scoped, tag = 'scoped memory for lstm_model_forward.1']
    #allocation6 [shape = 'u8[262144]{0}', space=vmem, size = 0x40000, scoped, tag = 'input window, operand 2, single buffered']
    #allocation7 [shape = 'u8[8192]{0}', space=vmem, size = 0x2000, scoped, tag = 'input window, operand 3, single buffered']
    #allocation8 [shape = 's32[1]{0}', space=sflag, size = 0x4, scoped, tag = 'scoped memory for lstm_model_forward.1']
    %9 = vsyncpa [#allocation3], 0
    %10 = vsyncpa [#allocation5], 0
    %11 = vsyncpa [#allocation8], 0
    // Predicated region
    $region2: #{lstm_model_forward.1} parent=1 // pred_check
      _
    $region3: #{lstm_model_forward.1} parent=1 // pred_check_branch
      %13 = sbr.rel (0) target = $region5
    $region4: #{lstm_model_forward.1} parent=1 // pred_region
      %s15 = ssub.s32 256, 256
      %16 = vsyncadd [#allocation3], %s15
      %s17 = sshll.u32 [#allocation2], 4
      %s18 = int_to_ptr.vmem [resolvable:$true] %s17
      %23 = dma.hbm_to_vmem [thread:$0]  %s0, 256, %s18, [#allocation3], 128, 128, 8
    $region5: #{lstm_model_forward.1} parent=1 // pred_fallthru
      _
    // Predicated region
    $region6: #{lstm_model_forward.1} parent=1 // pred_check
      _
    $region7: #{lstm_model_forward.1} parent=1 // pred_check_branch
      %25 = sbr.rel (0) target = $region9
    $region8: #{lstm_model_forward.1} parent=1 // pred_region
      %s27 = ssub.s32 6656, 6656
      %28 = vsyncadd [#allocation5], %s27
      %s29 = sshll.u32 [#allocation4], 4
      %s30 = int_to_ptr.vmem [resolvable:$true] %s29
      %35 = dma.hbm_to_vmem [thread:$0]  %s1, 6656, %s30, [#allocation5], 512, 512, 32
    $region9: #{lstm_model_forward.1} parent=1 // pred_fallthru
      _
    // Predicated region
    $region10: #{lstm_model_forward.1} parent=1 // pred_check
      _
    $region11: #{lstm_model_forward.1} parent=1 // pred_check_branch
      %37 = sbr.rel (0) target = $region13
    $region12: #{lstm_model_forward.1} parent=1 // pred_region
      %s39 = ssub.s32 8192, 8192
      %40 = vsyncadd [#allocation5], %s39
      %s41 = sshll.u32 [#allocation6], 4
      %s42 = int_to_ptr.vmem [resolvable:$true] %s41
      %47 = dma.hbm_to_vmem [thread:$0]  %s2, 8192, %s42, [#allocation5], 512, 512, 32
    $region13: #{lstm_model_forward.1} parent=1 // pred_fallthru
      _
    // Predicated region
    $region14: #{lstm_model_forward.1} parent=1 // pred_check
      _
    $region15: #{lstm_model_forward.1} parent=1 // pred_check_branch
      %49 = sbr.rel (0) target = $region17
    $region16: #{lstm_model_forward.1} parent=1 // pred_region
      %s51 = ssub.s32 256, 256
      %52 = vsyncadd [#allocation8], %s51
      %s54 = sshll.u32 [#allocation7], 4
      %s55 = int_to_ptr.vmem [resolvable:$true] %s54
      %57 = dma.hbm_to_vmem [thread:$0]  %s3, 256, %s55, [#allocation8]
    $region17: #{lstm_model_forward.1} parent=1 // pred_fallthru
      _
    // Predicated region
    $region18: #{lstm_model_forward.1} parent=1 // pred_check
      _
    $region19: #{lstm_model_forward.1} parent=1 // pred_check_branch
      %59 = sbr.rel (0) target = $region21
    $region20: #{lstm_model_forward.1} parent=1 // pred_region
      %60 = dma.done [#allocation3], 256
    $region21: #{lstm_model_forward.1} parent=1 // pred_fallthru
      _
    // Predicated region
    $region22: #{lstm_model_forward.1} parent=1 // pred_check
      _
    $region23: #{lstm_model_forward.1} parent=1 // pred_check_branch
      %62 = sbr.rel (0) target = $region25
    $region24: #{lstm_model_forward.1} parent=1 // pred_region
      %63 = dma.done [#allocation5], 6656
    $region25: #{lstm_model_forward.1} parent=1 // pred_fallthru
      _
    // Predicated region
    $region26: #{lstm_model_forward.1} parent=1 // pred_check
      _
    $region27: #{lstm_model_forward.1} parent=1 // pred_check_branch
      %65 = sbr.rel (0) target = $region29
    $region28: #{lstm_model_forward.1} parent=1 // pred_region
      %66 = dma.done [#allocation5], 8192
    $region29: #{lstm_model_forward.1} parent=1 // pred_fallthru
      _
    // Predicated region
    $region30: #{lstm_model_forward.1} parent=1 // pred_check
      _
    $region31: #{lstm_model_forward.1} parent=1 // pred_check_branch
      %68 = sbr.rel (0) target = $region33
    $region32: #{lstm_model_forward.1} parent=1 // pred_region
      %69 = dma.done [#allocation8], 256
    $region33: #{lstm_model_forward.1} parent=1 // pred_fallthru
      _
    %v70 = vld [vmem:[#allocation7] ss:$4 sm:$0xf]
    %v71 = vld [vmem:[#allocation7 + $0x1] sm:$0x1]
    %v72 = vld [vmem:[#allocation7 + $0x2] sm:$0x1]
    %v73 = vld [vmem:[#allocation2] sm:$0xff]
    %v74 = vld [vmem:[#allocation2 + $0x8] sm:$0xff]
    %v75 = vld [vmem:[#allocation4] sm:$0xff]
    %v76 = vld [vmem:[#allocation4 + $0x8] sm:$0xff]
    %v77 = vld [vmem:[#allocation4 + $0x10] sm:$0xff]
    %v78 = vld [vmem:[#allocation4 + $0x18] sm:$0xff]
    %v79 = vld [vmem:[#allocation4 + $0x20] sm:$0xff]
    %v80 = vld [vmem:[#allocation4 + $0x28] sm:$0xff]
    %v81 = vld [vmem:[#allocation4 + $0x30] sm:$0xff]
    %v82 = vld [vmem:[#allocation4 + $0x38] sm:$0xff]
    %v83 = vld [vmem:[#allocation4 + $0x40] sm:$0xff]
    %v84 = vld [vmem:[#allocation4 + $0x48] sm:$0xff]
    %v85 = vld [vmem:[#allocation4 + $0x50] sm:$0xff]
    %v86 = vld [vmem:[#allocation4 + $0x58] sm:$0xff]
    %v87 = vld [vmem:[#allocation4 + $0x60] sm:$0xff]
    %v88 = vld [vmem:[#allocation4 + $0x68] sm:$0xff]
    %v89 = vld [vmem:[#allocation4 + $0x70] sm:$0xff]
    %v90 = vld [vmem:[#allocation4 + $0x78] sm:$0xff]
    %v91 = vld [vmem:[#allocation4 + $0x80] sm:$0xff]
    %v92 = vld [vmem:[#allocation4 + $0x88] sm:$0xff]
    %v93 = vld [vmem:[#allocation4 + $0x90] sm:$0xff]
    %v94 = vld [vmem:[#allocation4 + $0x98] sm:$0xff]
    %v95 = vld [vmem:[#allocation4 + $0xa0] sm:$0xff]
    %v96 = vld [vmem:[#allocation4 + $0xa8] sm:$0xff]
    %v97 = vld [vmem:[#allocation4 + $0xb0] sm:$0xff]
    %v98 = vld [vmem:[#allocation4 + $0xb8] sm:$0xff]
    %v99 = vld [vmem:[#allocation4 + $0xc0] sm:$0xff]
    %v100 = vld [vmem:[#allocation4 + $0xc8] sm:$0xff]
    %v101 = vld [vmem:[#allocation4 + $0xd0] sm:$0xff]
    %v102 = vld [vmem:[#allocation4 + $0xd8] sm:$0xff]
    %v103 = vld [vmem:[#allocation4 + $0xe0] sm:$0xff]
    %v104 = vld [vmem:[#allocation4 + $0xe8] sm:$0xff]
    %v105 = vld [vmem:[#allocation4 + $0xf0] sm:$0xff]
    %v106 = vld [vmem:[#allocation4 + $0xf8] sm:$0xff]
    %v107 = vld [vmem:[#allocation4 + $0x100] sm:$0xff]
    %v108 = vld [vmem:[#allocation4 + $0x108] sm:$0xff]
    %v109 = vld [vmem:[#allocation4 + $0x110] sm:$0xff]
    %v110 = vld [vmem:[#allocation4 + $0x118] sm:$0xff]
    %v111 = vld [vmem:[#allocation4 + $0x120] sm:$0xff]
    %v112 = vld [vmem:[#allocation4 + $0x128] sm:$0xff]
    %v113 = vld [vmem:[#allocation4 + $0x130] sm:$0xff]
    %v114 = vld [vmem:[#allocation4 + $0x138] sm:$0xff]
    %v115 = vld [vmem:[#allocation4 + $0x140] sm:$0xff]
    %v116 = vld [vmem:[#allocation4 + $0x148] sm:$0xff]
    %v117 = vld [vmem:[#allocation4 + $0x150] sm:$0xff]
    %v118 = vld [vmem:[#allocation4 + $0x158] sm:$0xff]
    %v119 = vld [vmem:[#allocation4 + $0x160] sm:$0xff]
    %v120 = vld [vmem:[#allocation4 + $0x168] sm:$0xff]
    %v121 = vld [vmem:[#allocation4 + $0x170] sm:$0xff]
    %v122 = vld [vmem:[#allocation4 + $0x178] sm:$0xff]
    %v123 = vld [vmem:[#allocation4 + $0x180] sm:$0xf]
    %v124 = vld [vmem:[#allocation4 + $0x188] sm:$0xf]
    %v125 = vld [vmem:[#allocation4 + $0x190] sm:$0xf]
    %v126 = vld [vmem:[#allocation4 + $0x198] sm:$0xf]
    %v128 = vlaneseq
    %v129 = vshrl.u32 %v128, 7
    %v130 = vsub.s32 0, %v129
    %v131 = vrot.slane %v70, %v130
    %v132 = vlaneseq
    %v133 = vshrl.u32 %v132, 7
    %v134 = vsub.s32 1, %v133
    %v135 = vrot.slane %v70, %v134
    %v136 = vlaneseq
    %v137 = vshrl.u32 %v136, 7
    %v138 = vsub.s32 2, %v137
    %v139 = vrot.slane %v70, %v138
    %v140 = vlaneseq
    %v141 = vshrl.u32 %v140, 7
    %v142 = vsub.s32 3, %v141
    %v143 = vrot.slane %v70, %v142
    %vm148 = vcmask 818176
    %v150 = vsel %vm148, %v73, 0
    %v153 = vsel %vm148, %v74, 0
    %vm155 = vcmask 1043456
    %v157 = vsel %vm155, %v123, 0
    %v160 = vsel %vm155, %v124, 0
    %v163 = vsel %vm155, %v125, 0
    %v166 = vsel %vm155, %v126, 0
    %168 = vmatprep.subr.mxu0 %v76
    %169 = vmatpush1.msra.mxu0 %v75
    %170 = vmatprep.subr.mxu0 %v80
    %171 = vmatpush1.msra.mxu0 %v79
    %172 = vmatprep.subr.mxu0 %v84
    %173 = vmatpush1.msra.mxu0 %v83
    %174 = vmatprep.subr.mxu0 %v88
    %175 = vmatpush1.msra.mxu0 %v87
    %176 = vmatprep.subr.mxu0 %v92
    %177 = vmatpush1.msra.mxu0 %v91
    %178 = vmatprep.subr.mxu0 %v96
    %179 = vmatpush1.msra.mxu0 %v95
    %180 = vmatprep.subr.mxu0 %v100
    %181 = vmatpush1.msra.mxu0 %v99
    %182 = vmatprep.subr.mxu0 %v104
    %183 = vmatpush1.msra.mxu0 %v103
    %184 = vmatprep.subr.mxu0 %v108
    %185 = vmatpush1.msra.mxu0 %v107
    %186 = vmatprep.subr.mxu0 %v112
    %187 = vmatpush1.msra.mxu0 %v111
    %188 = vmatprep.subr.mxu0 %v116
    %189 = vmatpush1.msra.mxu0 %v115
    %190 = vmatprep.subr.mxu0 %v120
    %191 = vmatpush1.msra.mxu0 %v119
    %192 = vmatprep.subr.mxu0 %v160
    %193 = vmatpush1.msra.mxu0 %v157
    %194 = vmatprep.subr.mxu0 0.0
    %195 = vmatpush1.msra.mxu0 0.0
    %196 = vmatprep.subr.mxu0 0.0
    %197 = vmatpush1.msra.mxu0 0.0
    %198 = vmatprep.subr.mxu0 0.0
    %199 = vmatpush1.msra.mxu0 0.0
    %200 = vmatprep.subr.mxu0 0.0
    %201 = vmatpush1.msra.mxu0 0.0
    %202 = vmatprep.subr.mxu0 0.0
    %203 = vmatpush1.msra.mxu0 0.0
    %204 = vmatprep.subr.mxu0 0.0
    %205 = vmatpush1.msra.mxu0 0.0
    %206 = vmatprep.subr.mxu0 0.0
    %207 = vmatpush1.msra.mxu0 0.0
    %208 = vmatprep.subr.mxu0 0.0
    %209 = vmatpush1.msra.mxu0 0.0
    %210 = vmatprep.subr.mxu0 0.0
    %211 = vmatpush1.msra.mxu0 0.0
    %212 = vmatprep.subr.mxu0 0.0
    %213 = vmatpush1.msra.mxu0 0.0
    %214 = vmatprep.subr.mxu0 0.0
    %215 = vmatpush1.msra.mxu0 0.0
    %216 = vmatprep.subr.mxu0 0.0
    %217 = vmatpush1.msra.mxu0 0.0
    %218 = vmatprep.subr.mxu0 0.0
    %219 = vmatpush1.msra.mxu0 0.0
    %220 = vmatprep.subr.mxu0 0.0
    %221 = vmatpush1.msra.mxu0 0.0
    %222 = vmatprep.subr.mxu0 0.0
    %223 = vmatpush1.msra.mxu0 0.0
    %224 = vmatprep.subr.mxu0 0.0
    %225 = vmatpush1.msra.mxu0 0.0
    %226 = vmatprep.subr.mxu0 0.0
    %227 = vmatpush1.msra.mxu0 0.0
    %228 = vmatprep.subr.mxu0 0.0
    %229 = vmatpush1.msra.mxu0 0.0
    %230 = vmatprep.subr.mxu0 0.0
    %231 = vmatpush1.msra.mxu0 0.0
    %232 = vmatprep.mubr.f32.mxu0 0.0
    %233 = vmatmul.mubr.f32.gmra.mrb[0].mxu0 %v150
    %v234 = vpop.f32.mrb[0].mxu0
    %v235 = vadd.f32 %v131, %v234
    %v236 = vpop.f32.mrb[0].mxu0
    %v237 = vadd.f32 %v135, %v236
    %238 = vmatprep.mubr.f32.mxu0 0.0
    %239 = vmatmul.mubr.f32.gmra.mrb[0].mxu0 %v153
    %v240 = vpop.f32.mrb[0].mxu0
    %v241 = vadd.f32 %v131, %v240
    %v242 = vpop.f32.mrb[0].mxu0
    %v243 = vadd.f32 %v135, %v242
    %244 = vdwg.mxu0
    %245 = vmatprep.subr.mxu0 %v78
    %246 = vmatpush1.msra.mxu0 %v77
    %247 = vmatprep.subr.mxu0 %v82
    %248 = vmatpush1.msra.mxu0 %v81
    %249 = vmatprep.subr.mxu0 %v86
    %250 = vmatpush1.msra.mxu0 %v85
    %251 = vmatprep.subr.mxu0 %v90
    %252 = vmatpush1.msra.mxu0 %v89
    %253 = vmatprep.subr.mxu0 %v94
    %254 = vmatpush1.msra.mxu0 %v93
    %255 = vmatprep.subr.mxu0 %v98
    %256 = vmatpush1.msra.mxu0 %v97
    %257 = vmatprep.subr.mxu0 %v102
    %258 = vmatpush1.msra.mxu0 %v101
    %259 = vmatprep.subr.mxu0 %v106
    %260 = vmatpush1.msra.mxu0 %v105
    %261 = vmatprep.subr.mxu0 %v110
    %262 = vmatpush1.msra.mxu0 %v109
    %263 = vmatprep.subr.mxu0 %v114
    %264 = vmatpush1.msra.mxu0 %v113
    %265 = vmatprep.subr.mxu0 %v118
    %266 = vmatpush1.msra.mxu0 %v117
    %267 = vmatprep.subr.mxu0 %v122
    %268 = vmatpush1.msra.mxu0 %v121
    %269 = vmatprep.subr.mxu0 %v166
    %270 = vmatpush1.msra.mxu0 %v163
    %271 = vmatprep.subr.mxu0 0.0
    %272 = vmatpush1.msra.mxu0 0.0
    %273 = vmatprep.subr.mxu0 0.0
    %274 = vmatpush1.msra.mxu0 0.0
    %275 = vmatprep.subr.mxu0 0.0
    %276 = vmatpush1.msra.mxu0 0.0
    %277 = vmatprep.subr.mxu0 0.0
    %278 = vmatpush1.msra.mxu0 0.0
    %279 = vmatprep.subr.mxu0 0.0
    %280 = vmatpush1.msra.mxu0 0.0
    %281 = vmatprep.subr.mxu0 0.0
    %282 = vmatpush1.msra.mxu0 0.0
    %283 = vmatprep.subr.mxu0 0.0
    %284 = vmatpush1.msra.mxu0 0.0
    %285 = vmatprep.subr.mxu0 0.0
    %286 = vmatpush1.msra.mxu0 0.0
    %287 = vmatprep.subr.mxu0 0.0
    %288 = vmatpush1.msra.mxu0 0.0
    %289 = vmatprep.subr.mxu0 0.0
    %290 = vmatpush1.msra.mxu0 0.0
    %291 = vmatprep.subr.mxu0 0.0
    %292 = vmatpush1.msra.mxu0 0.0
    %293 = vmatprep.subr.mxu0 0.0
    %294 = vmatpush1.msra.mxu0 0.0
    %295 = vmatprep.subr.mxu0 0.0
    %296 = vmatpush1.msra.mxu0 0.0
    %297 = vmatprep.subr.mxu0 0.0
    %298 = vmatpush1.msra.mxu0 0.0
    %299 = vmatprep.subr.mxu0 0.0
    %300 = vmatpush1.msra.mxu0 0.0
    %301 = vmatprep.subr.mxu0 0.0
    %302 = vmatpush1.msra.mxu0 0.0
    %303 = vmatprep.subr.mxu0 0.0
    %304 = vmatpush1.msra.mxu0 0.0
    %305 = vmatprep.subr.mxu0 0.0
    %306 = vmatpush1.msra.mxu0 0.0
    %307 = vmatprep.subr.mxu0 0.0
    %308 = vmatpush1.msra.mxu0 0.0
    %309 = vmatprep.mubr.f32.mxu0 0.0
    %310 = vmatmul.mubr.f32.gmra.mrb[0].mxu0 %v150
    %v311 = vpop.f32.mrb[0].mxu0
    %v312 = vadd.f32 %v139, %v311
    %v313 = vpop.f32.mrb[0].mxu0
    %v314 = vadd.f32 %v143, %v313
    %315 = vmatprep.mubr.f32.mxu0 0.0
    %316 = vmatmul.mubr.f32.gmra.mrb[0].mxu0 %v153
    %v317 = vpop.f32.mrb[0].mxu0
    %v318 = vadd.f32 %v139, %v317
    %v319 = vpop.f32.mrb[0].mxu0
    %v320 = vadd.f32 %v143, %v319
    %321 = vdwg.mxu0
    %v322 = vld [vmem:[#allocation6] sm:$0xff]
    %v323 = vld [vmem:[#allocation6 + $0x8] sm:$0xff]
    %v324 = vld [vmem:[#allocation6 + $0x10] sm:$0xff]
    %v325 = vld [vmem:[#allocation6 + $0x18] sm:$0xff]
    %v326 = vld [vmem:[#allocation6 + $0x20] sm:$0xff]
    %v327 = vld [vmem:[#allocation6 + $0x28] sm:$0xff]
    %v328 = vld [vmem:[#allocation6 + $0x30] sm:$0xff]
    %v329 = vld [vmem:[#allocation6 + $0x38] sm:$0xff]
    %v330 = vld [vmem:[#allocation6 + $0x40] sm:$0xff]
    %v331 = vld [vmem:[#allocation6 + $0x48] sm:$0xff]
    %v332 = vld [vmem:[#allocation6 + $0x50] sm:$0xff]
    %v333 = vld [vmem:[#allocation6 + $0x58] sm:$0xff]
    %v334 = vld [vmem:[#allocation6 + $0x60] sm:$0xff]
    %v335 = vld [vmem:[#allocation6 + $0x68] sm:$0xff]
    %v336 = vld [vmem:[#allocation6 + $0x70] sm:$0xff]
    %v337 = vld [vmem:[#allocation6 + $0x78] sm:$0xff]
    %v338 = vld [vmem:[#allocation6 + $0x80] sm:$0xff]
    %v339 = vld [vmem:[#allocation6 + $0x88] sm:$0xff]
    %v340 = vld [vmem:[#allocation6 + $0x90] sm:$0xff]
    %v341 = vld [vmem:[#allocation6 + $0x98] sm:$0xff]
    %v342 = vld [vmem:[#allocation6 + $0xa0] sm:$0xff]
    %v343 = vld [vmem:[#allocation6 + $0xa8] sm:$0xff]
    %v344 = vld [vmem:[#allocation6 + $0xb0] sm:$0xff]
    %v345 = vld [vmem:[#allocation6 + $0xb8] sm:$0xff]
    %v346 = vld [vmem:[#allocation6 + $0xc0] sm:$0xff]
    %v347 = vld [vmem:[#allocation6 + $0xc8] sm:$0xff]
    %v348 = vld [vmem:[#allocation6 + $0xd0] sm:$0xff]
    %v349 = vld [vmem:[#allocation6 + $0xd8] sm:$0xff]
    %v350 = vld [vmem:[#allocation6 + $0xe0] sm:$0xff]
    %v351 = vld [vmem:[#allocation6 + $0xe8] sm:$0xff]
    %v352 = vld [vmem:[#allocation6 + $0xf0] sm:$0xff]
    %v353 = vld [vmem:[#allocation6 + $0xf8] sm:$0xff]
    %v354 = vld [vmem:[#allocation6 + $0x100] sm:$0xff]
    %v355 = vld [vmem:[#allocation6 + $0x108] sm:$0xff]
    %v356 = vld [vmem:[#allocation6 + $0x110] sm:$0xff]
    %v357 = vld [vmem:[#allocation6 + $0x118] sm:$0xff]
    %v358 = vld [vmem:[#allocation6 + $0x120] sm:$0xff]
    %v359 = vld [vmem:[#allocation6 + $0x128] sm:$0xff]
    %v360 = vld [vmem:[#allocation6 + $0x130] sm:$0xff]
    %v361 = vld [vmem:[#allocation6 + $0x138] sm:$0xff]
    %v362 = vld [vmem:[#allocation6 + $0x140] sm:$0xff]
    %v363 = vld [vmem:[#allocation6 + $0x148] sm:$0xff]
    %v364 = vld [vmem:[#allocation6 + $0x150] sm:$0xff]
    %v365 = vld [vmem:[#allocation6 + $0x158] sm:$0xff]
    %v366 = vld [vmem:[#allocation6 + $0x160] sm:$0xff]
    %v367 = vld [vmem:[#allocation6 + $0x168] sm:$0xff]
    %v368 = vld [vmem:[#allocation6 + $0x170] sm:$0xff]
    %v369 = vld [vmem:[#allocation6 + $0x178] sm:$0xff]
    %v370 = vld [vmem:[#allocation6 + $0x180] sm:$0xff]
    %v371 = vld [vmem:[#allocation6 + $0x188] sm:$0xff]
    %v372 = vld [vmem:[#allocation6 + $0x190] sm:$0xff]
    %v373 = vld [vmem:[#allocation6 + $0x198] sm:$0xff]
    %v374 = vld [vmem:[#allocation6 + $0x1a0] sm:$0xff]
    %v375 = vld [vmem:[#allocation6 + $0x1a8] sm:$0xff]
    %v376 = vld [vmem:[#allocation6 + $0x1b0] sm:$0xff]
    %v377 = vld [vmem:[#allocation6 + $0x1b8] sm:$0xff]
    %v378 = vld [vmem:[#allocation6 + $0x1c0] sm:$0xff]
    %v379 = vld [vmem:[#allocation6 + $0x1c8] sm:$0xff]
    %v380 = vld [vmem:[#allocation6 + $0x1d0] sm:$0xff]
    %v381 = vld [vmem:[#allocation6 + $0x1d8] sm:$0xff]
    %v382 = vld [vmem:[#allocation6 + $0x1e0] sm:$0xff]
    %v383 = vld [vmem:[#allocation6 + $0x1e8] sm:$0xff]
    %v384 = vld [vmem:[#allocation6 + $0x1f0] sm:$0xff]
    %v385 = vld [vmem:[#allocation6 + $0x1f8] sm:$0xff]
    %v390 = vrot.slane %v241, 7
    %v391 = vrot.slane %v243, 7
    %v392 = vrot.slane %v318, 7
    %v393 = vrot.slane %v320, 7
    %vm398 = vcmask 1040384
    %v399 = vsel %vm398, %v235, %v390
    %v400 = vsel %vm398, %v237, %v391
    %v401 = vsel %vm398, %v312, %v392
    %v402 = vsel %vm398, %v314, %v393
    %403 = vmatprep.subr.mxu0 %v323
    %404 = vmatpush1.msra.mxu0 %v322
    %405 = vmatprep.subr.mxu0 %v327
    %406 = vmatpush1.msra.mxu0 %v326
    %407 = vmatprep.subr.mxu0 %v331
    %408 = vmatpush1.msra.mxu0 %v330
    %409 = vmatprep.subr.mxu0 %v335
    %410 = vmatpush1.msra.mxu0 %v334
    %411 = vmatprep.subr.mxu0 %v339
    %412 = vmatpush1.msra.mxu0 %v338
    %413 = vmatprep.subr.mxu0 %v343
    %414 = vmatpush1.msra.mxu0 %v342
    %415 = vmatprep.subr.mxu0 %v347
    %416 = vmatpush1.msra.mxu0 %v346
    %417 = vmatprep.subr.mxu0 %v351
    %418 = vmatpush1.msra.mxu0 %v350
    %419 = vmatprep.subr.mxu0 %v355
    %420 = vmatpush1.msra.mxu0 %v354
    %421 = vmatprep.subr.mxu0 %v359
    %422 = vmatpush1.msra.mxu0 %v358
    %423 = vmatprep.subr.mxu0 %v363
    %424 = vmatpush1.msra.mxu0 %v362
    %425 = vmatprep.subr.mxu0 %v367
    %426 = vmatpush1.msra.mxu0 %v366
    %427 = vmatprep.subr.mxu0 %v371
    %428 = vmatpush1.msra.mxu0 %v370
    %429 = vmatprep.subr.mxu0 %v375
    %430 = vmatpush1.msra.mxu0 %v374
    %431 = vmatprep.subr.mxu0 %v379
    %432 = vmatpush1.msra.mxu0 %v378
    %433 = vmatprep.subr.mxu0 %v383
    %434 = vmatpush1.msra.mxu0 %v382
    %435 = vmatprep.subr.mxu0 0.0
    %436 = vmatpush1.msra.mxu0 0.0
    %437 = vmatprep.subr.mxu0 0.0
    %438 = vmatpush1.msra.mxu0 0.0
    %439 = vmatprep.subr.mxu0 0.0
    %440 = vmatpush1.msra.mxu0 0.0
    %441 = vmatprep.subr.mxu0 0.0
    %442 = vmatpush1.msra.mxu0 0.0
    %443 = vmatprep.subr.mxu0 0.0
    %444 = vmatpush1.msra.mxu0 0.0
    %445 = vmatprep.subr.mxu0 0.0
    %446 = vmatpush1.msra.mxu0 0.0
    %447 = vmatprep.subr.mxu0 0.0
    %448 = vmatpush1.msra.mxu0 0.0
    %449 = vmatprep.subr.mxu0 0.0
    %450 = vmatpush1.msra.mxu0 0.0
    %451 = vmatprep.subr.mxu0 0.0
    %452 = vmatpush1.msra.mxu0 0.0
    %453 = vmatprep.subr.mxu0 0.0
    %454 = vmatpush1.msra.mxu0 0.0
    %455 = vmatprep.subr.mxu0 0.0
    %456 = vmatpush1.msra.mxu0 0.0
    %457 = vmatprep.subr.mxu0 0.0
    %458 = vmatpush1.msra.mxu0 0.0
    %459 = vmatprep.subr.mxu0 0.0
    %460 = vmatpush1.msra.mxu0 0.0
    %461 = vmatprep.subr.mxu0 0.0
    %462 = vmatpush1.msra.mxu0 0.0
    %463 = vmatprep.subr.mxu0 0.0
    %464 = vmatpush1.msra.mxu0 0.0
    %465 = vmatprep.subr.mxu0 0.0
    %466 = vmatpush1.msra.mxu0 0.0
    %467 = vmatprep.mubr.f32.mxu0 0.0
    %468 = vmatmul.mubr.f32.gmra.mrb[0].mxu0 0.0
    %v469 = vpop.f32.mrb[0].mxu0
    %v470 = vadd.f32 0.0, %v469
    %v471 = vpop.f32.mrb[0].mxu0
    %v472 = vadd.f32 0.0, %v471
    %473 = vdwg.mxu0
    %474 = vmatprep.subr.mxu0 %v325
    %475 = vmatpush1.msra.mxu0 %v324
    %476 = vmatprep.subr.mxu0 %v329
    %477 = vmatpush1.msra.mxu0 %v328
    %478 = vmatprep.subr.mxu0 %v333
    %479 = vmatpush1.msra.mxu0 %v332
    %480 = vmatprep.subr.mxu0 %v337
    %481 = vmatpush1.msra.mxu0 %v336
    %482 = vmatprep.subr.mxu0 %v341
    %483 = vmatpush1.msra.mxu0 %v340
    %484 = vmatprep.subr.mxu0 %v345
    %485 = vmatpush1.msra.mxu0 %v344
    %486 = vmatprep.subr.mxu0 %v349
    %487 = vmatpush1.msra.mxu0 %v348
    %488 = vmatprep.subr.mxu0 %v353
    %489 = vmatpush1.msra.mxu0 %v352
    %490 = vmatprep.subr.mxu0 %v357
    %491 = vmatpush1.msra.mxu0 %v356
    %492 = vmatprep.subr.mxu0 %v361
    %493 = vmatpush1.msra.mxu0 %v360
    %494 = vmatprep.subr.mxu0 %v365
    %495 = vmatpush1.msra.mxu0 %v364
    %496 = vmatprep.subr.mxu0 %v369
    %497 = vmatpush1.msra.mxu0 %v368
    %498 = vmatprep.subr.mxu0 %v373
    %499 = vmatpush1.msra.mxu0 %v372
    %500 = vmatprep.subr.mxu0 %v377
    %501 = vmatpush1.msra.mxu0 %v376
    %502 = vmatprep.subr.mxu0 %v381
    %503 = vmatpush1.msra.mxu0 %v380
    %504 = vmatprep.subr.mxu0 %v385
    %505 = vmatpush1.msra.mxu0 %v384
    %506 = vmatprep.subr.mxu0 0.0
    %507 = vmatpush1.msra.mxu0 0.0
    %508 = vmatprep.subr.mxu0 0.0
    %509 = vmatpush1.msra.mxu0 0.0
    %510 = vmatprep.subr.mxu0 0.0
    %511 = vmatpush1.msra.mxu0 0.0
    %512 = vmatprep.subr.mxu0 0.0
    %513 = vmatpush1.msra.mxu0 0.0
    %514 = vmatprep.subr.mxu0 0.0
    %515 = vmatpush1.msra.mxu0 0.0
    %516 = vmatprep.subr.mxu0 0.0
    %517 = vmatpush1.msra.mxu0 0.0
    %518 = vmatprep.subr.mxu0 0.0
    %519 = vmatpush1.msra.mxu0 0.0
    %520 = vmatprep.subr.mxu0 0.0
    %521 = vmatpush1.msra.mxu0 0.0
    %522 = vmatprep.subr.mxu0 0.0
    %523 = vmatpush1.msra.mxu0 0.0
    %524 = vmatprep.subr.mxu0 0.0
    %525 = vmatpush1.msra.mxu0 0.0
    %526 = vmatprep.subr.mxu0 0.0
    %527 = vmatpush1.msra.mxu0 0.0
    %528 = vmatprep.subr.mxu0 0.0
    %529 = vmatpush1.msra.mxu0 0.0
    %530 = vmatprep.subr.mxu0 0.0
    %531 = vmatpush1.msra.mxu0 0.0
    %532 = vmatprep.subr.mxu0 0.0
    %533 = vmatpush1.msra.mxu0 0.0
    %534 = vmatprep.subr.mxu0 0.0
    %535 = vmatpush1.msra.mxu0 0.0
    %536 = vmatprep.subr.mxu0 0.0
    %537 = vmatpush1.msra.mxu0 0.0
    %538 = vmatprep.mubr.f32.mxu0 0.0
    %539 = vmatmul.mubr.f32.gmra.mrb[0].mxu0 0.0
    %v540 = vpop.f32.mrb[0].mxu0
    %v541 = vadd.f32 0.0, %v540
    %v542 = vpop.f32.mrb[0].mxu0
    %v543 = vadd.f32 0.0, %v542
    %544 = vdwg.mxu0
    %v545 = vadd.f32 %v399, %v470
    %v546 = vadd.f32 %v400, %v472
    %v547 = vadd.f32 %v401, %v541
    %v548 = vadd.f32 %v402, %v543
    %v549 = vxor.u32 %v545, 2147483648
    %v550 = vxor.u32 %v546, 2147483648
    %v551 = vxor.u32 %v547, 2147483648
    %v552 = vmul.f32 %v549, 1.442695
    %v553 = vpow.pop %v552
    %v554 = vmul.f32 %v550, 1.442695
    %v555 = vpow.pop %v554
    %v556 = vmul.f32 %v551, 1.442695
    %v557 = vpow.pop %v556
    %v558 = vadd.f32 %v553, 1.0
    %v559 = vadd.f32 %v555, 1.0
    %v560 = vadd.f32 %v557, 1.0
    %v561 = vrcp.pop %v558
    %v562 = vmul.f32 1.0, %v561
    %v563 = vrcp.pop %v559
    %v564 = vmul.f32 1.0, %v563
    %v565 = vrcp.pop %v560
    %v566 = vmul.f32 1.0, %v565
    %v567 = vtanh.pop %v548
    %v568 = vmul.f32 %v564, 0.0
    %v569 = vmul.f32 %v562, %v567
    %v570 = vadd.f32 %v568, %v569
    %v571 = vtanh.pop %v570
    %v572 = vmul.f32 %v566, %v571
    %v577 = vrot.slane %v235, 1
    %v578 = vrot.slane %v237, 1
    %v579 = vrot.slane %v312, 1
    %v580 = vrot.slane %v314, 1
    %v585 = vsel %vm398, %v577, %v241
    %v586 = vsel %vm398, %v578, %v243
    %v587 = vsel %vm398, %v579, %v318
    %v588 = vsel %vm398, %v580, %v320
    %589 = vmatprep.subr.mxu0 %v323
    %590 = vmatpush1.msra.mxu0 %v322
    %591 = vmatprep.subr.mxu0 %v327
    %592 = vmatpush1.msra.mxu0 %v326
    %593 = vmatprep.subr.mxu0 %v331
    %594 = vmatpush1.msra.mxu0 %v330
    %595 = vmatprep.subr.mxu0 %v335
    %596 = vmatpush1.msra.mxu0 %v334
    %597 = vmatprep.subr.mxu0 %v339
    %598 = vmatpush1.msra.mxu0 %v338
    %599 = vmatprep.subr.mxu0 %v343
    %600 = vmatpush1.msra.mxu0 %v342
    %601 = vmatprep.subr.mxu0 %v347
    %602 = vmatpush1.msra.mxu0 %v346
    %603 = vmatprep.subr.mxu0 %v351
    %604 = vmatpush1.msra.mxu0 %v350
    %605 = vmatprep.subr.mxu0 %v355
    %606 = vmatpush1.msra.mxu0 %v354
    %607 = vmatprep.subr.mxu0 %v359
    %608 = vmatpush1.msra.mxu0 %v358
    %609 = vmatprep.subr.mxu0 %v363
    %610 = vmatpush1.msra.mxu0 %v362
    %611 = vmatprep.subr.mxu0 %v367
    %612 = vmatpush1.msra.mxu0 %v366
    %613 = vmatprep.subr.mxu0 %v371
    %614 = vmatpush1.msra.mxu0 %v370
    %615 = vmatprep.subr.mxu0 %v375
    %616 = vmatpush1.msra.mxu0 %v374
    %617 = vmatprep.subr.mxu0 %v379
    %618 = vmatpush1.msra.mxu0 %v378
    %619 = vmatprep.subr.mxu0 %v383
    %620 = vmatpush1.msra.mxu0 %v382
    %621 = vmatprep.subr.mxu0 0.0
    %622 = vmatpush1.msra.mxu0 0.0
    %623 = vmatprep.subr.mxu0 0.0
    %624 = vmatpush1.msra.mxu0 0.0
    %625 = vmatprep.subr.mxu0 0.0
    %626 = vmatpush1.msra.mxu0 0.0
    %627 = vmatprep.subr.mxu0 0.0
    %628 = vmatpush1.msra.mxu0 0.0
    %629 = vmatprep.subr.mxu0 0.0
    %630 = vmatpush1.msra.mxu0 0.0
    %631 = vmatprep.subr.mxu0 0.0
    %632 = vmatpush1.msra.mxu0 0.0
    %633 = vmatprep.subr.mxu0 0.0
    %634 = vmatpush1.msra.mxu0 0.0
    %635 = vmatprep.subr.mxu0 0.0
    %636 = vmatpush1.msra.mxu0 0.0
    %637 = vmatprep.subr.mxu0 0.0
    %638 = vmatpush1.msra.mxu0 0.0
    %639 = vmatprep.subr.mxu0 0.0
    %640 = vmatpush1.msra.mxu0 0.0
    %641 = vmatprep.subr.mxu0 0.0
    %642 = vmatpush1.msra.mxu0 0.0
    %643 = vmatprep.subr.mxu0 0.0
    %644 = vmatpush1.msra.mxu0 0.0
    %645 = vmatprep.subr.mxu0 0.0
    %646 = vmatpush1.msra.mxu0 0.0
    %647 = vmatprep.subr.mxu0 0.0
    %648 = vmatpush1.msra.mxu0 0.0
    %649 = vmatprep.subr.mxu0 0.0
    %650 = vmatpush1.msra.mxu0 0.0
    %651 = vmatprep.subr.mxu0 0.0
    %652 = vmatpush1.msra.mxu0 0.0
    %653 = vmatprep.mubr.f32.mxu0 0.0
    %654 = vmatmul.mubr.f32.gmra.mrb[0].mxu0 %v572
    %v655 = vpop.f32.mrb[0].mxu0
    %v656 = vadd.f32 0.0, %v655
    %v657 = vpop.f32.mrb[0].mxu0
    %v658 = vadd.f32 0.0, %v657
    %659 = vdwg.mxu0
    %660 = vmatprep.subr.mxu0 %v325
    %661 = vmatpush1.msra.mxu0 %v324
    %662 = vmatprep.subr.mxu0 %v329
    %663 = vmatpush1.msra.mxu0 %v328
    %664 = vmatprep.subr.mxu0 %v333
    %665 = vmatpush1.msra.mxu0 %v332
    %666 = vmatprep.subr.mxu0 %v337
    %667 = vmatpush1.msra.mxu0 %v336
    %668 = vmatprep.subr.mxu0 %v341
    %669 = vmatpush1.msra.mxu0 %v340
    %670 = vmatprep.subr.mxu0 %v345
    %671 = vmatpush1.msra.mxu0 %v344
    %672 = vmatprep.subr.mxu0 %v349
    %673 = vmatpush1.msra.mxu0 %v348
    %674 = vmatprep.subr.mxu0 %v353
    %675 = vmatpush1.msra.mxu0 %v352
    %676 = vmatprep.subr.mxu0 %v357
    %677 = vmatpush1.msra.mxu0 %v356
    %678 = vmatprep.subr.mxu0 %v361
    %679 = vmatpush1.msra.mxu0 %v360
    %680 = vmatprep.subr.mxu0 %v365
    %681 = vmatpush1.msra.mxu0 %v364
    %682 = vmatprep.subr.mxu0 %v369
    %683 = vmatpush1.msra.mxu0 %v368
    %684 = vmatprep.subr.mxu0 %v373
    %685 = vmatpush1.msra.mxu0 %v372
    %686 = vmatprep.subr.mxu0 %v377
    %687 = vmatpush1.msra.mxu0 %v376
    %688 = vmatprep.subr.mxu0 %v381
    %689 = vmatpush1.msra.mxu0 %v380
    %690 = vmatprep.subr.mxu0 %v385
    %691 = vmatpush1.msra.mxu0 %v384
    %692 = vmatprep.subr.mxu0 0.0
    %693 = vmatpush1.msra.mxu0 0.0
    %694 = vmatprep.subr.mxu0 0.0
    %695 = vmatpush1.msra.mxu0 0.0
    %696 = vmatprep.subr.mxu0 0.0
    %697 = vmatpush1.msra.mxu0 0.0
    %698 = vmatprep.subr.mxu0 0.0
    %699 = vmatpush1.msra.mxu0 0.0
    %700 = vmatprep.subr.mxu0 0.0
    %701 = vmatpush1.msra.mxu0 0.0
    %702 = vmatprep.subr.mxu0 0.0
    %703 = vmatpush1.msra.mxu0 0.0
    %704 = vmatprep.subr.mxu0 0.0
    %705 = vmatpush1.msra.mxu0 0.0
    %706 = vmatprep.subr.mxu0 0.0
    %707 = vmatpush1.msra.mxu0 0.0
    %708 = vmatprep.subr.mxu0 0.0
    %709 = vmatpush1.msra.mxu0 0.0
    %710 = vmatprep.subr.mxu0 0.0
    %711 = vmatpush1.msra.mxu0 0.0
    %712 = vmatprep.subr.mxu0 0.0
    %713 = vmatpush1.msra.mxu0 0.0
    %714 = vmatprep.subr.mxu0 0.0
    %715 = vmatpush1.msra.mxu0 0.0
    %716 = vmatprep.subr.mxu0 0.0
    %717 = vmatpush1.msra.mxu0 0.0
    %718 = vmatprep.subr.mxu0 0.0
    %719 = vmatpush1.msra.mxu0 0.0
    %720 = vmatprep.subr.mxu0 0.0
    %721 = vmatpush1.msra.mxu0 0.0
    %722 = vmatprep.subr.mxu0 0.0
    %723 = vmatpush1.msra.mxu0 0.0
    %724 = vmatprep.mubr.f32.mxu0 0.0
    %725 = vmatmul.mubr.f32.gmra.mrb[0].mxu0 %v572
    %v726 = vpop.f32.mrb[0].mxu0
    %v727 = vadd.f32 0.0, %v726
    %v728 = vpop.f32.mrb[0].mxu0
    %v729 = vadd.f32 0.0, %v728
    %730 = vdwg.mxu0
    %v731 = vadd.f32 %v585, %v656
    %v732 = vadd.f32 %v586, %v658
    %v733 = vadd.f32 %v587, %v727
    %v734 = vadd.f32 %v588, %v729
    %v735 = vxor.u32 %v731, 2147483648
    %v736 = vxor.u32 %v732, 2147483648
    %v737 = vxor.u32 %v733, 2147483648
    %v738 = vmul.f32 %v735, 1.442695
    %v739 = vpow.pop %v738
    %v740 = vmul.f32 %v736, 1.442695
    %v741 = vpow.pop %v740
    %v742 = vmul.f32 %v737, 1.442695
    %v743 = vpow.pop %v742
    %v744 = vadd.f32 %v739, 1.0
    %v745 = vadd.f32 %v741, 1.0
    %v746 = vadd.f32 %v743, 1.0
    %v747 = vrcp.pop %v744
    %v748 = vmul.f32 1.0, %v747
    %v749 = vrcp.pop %v745
    %v750 = vmul.f32 1.0, %v749
    %v751 = vrcp.pop %v746
    %v752 = vmul.f32 1.0, %v751
    %v753 = vtanh.pop %v734
    %v754 = vmul.f32 %v750, %v570
    %v755 = vmul.f32 %v748, %v753
    %v756 = vadd.f32 %v754, %v755
    %v757 = vtanh.pop %v756
    %v758 = vmul.f32 %v752, %v757
    %v759 = vrot.slane %v235, 2
    %v760 = vrot.slane %v237, 2
    %v761 = vrot.slane %v312, 2
    %v762 = vrot.slane %v314, 2
    %v767 = vrot.slane %v241, 1
    %v768 = vrot.slane %v243, 1
    %v769 = vrot.slane %v318, 1
    %v770 = vrot.slane %v320, 1
    %v775 = vsel %vm398, %v759, %v767
    %v776 = vsel %vm398, %v760, %v768
    %v777 = vsel %vm398, %v761, %v769
    %v778 = vsel %vm398, %v762, %v770
    %779 = vmatprep.subr.mxu0 %v323
    %780 = vmatpush1.msra.mxu0 %v322
    %781 = vmatprep.subr.mxu0 %v327
    %782 = vmatpush1.msra.mxu0 %v326
    %783 = vmatprep.subr.mxu0 %v331
    %784 = vmatpush1.msra.mxu0 %v330
    %785 = vmatprep.subr.mxu0 %v335
    %786 = vmatpush1.msra.mxu0 %v334
    %787 = vmatprep.subr.mxu0 %v339
    %788 = vmatpush1.msra.mxu0 %v338
    %789 = vmatprep.subr.mxu0 %v343
    %790 = vmatpush1.msra.mxu0 %v342
    %791 = vmatprep.subr.mxu0 %v347
    %792 = vmatpush1.msra.mxu0 %v346
    %793 = vmatprep.subr.mxu0 %v351
    %794 = vmatpush1.msra.mxu0 %v350
    %795 = vmatprep.subr.mxu0 %v355
    %796 = vmatpush1.msra.mxu0 %v354
    %797 = vmatprep.subr.mxu0 %v359
    %798 = vmatpush1.msra.mxu0 %v358
    %799 = vmatprep.subr.mxu0 %v363
    %800 = vmatpush1.msra.mxu0 %v362
    %801 = vmatprep.subr.mxu0 %v367
    %802 = vmatpush1.msra.mxu0 %v366
    %803 = vmatprep.subr.mxu0 %v371
    %804 = vmatpush1.msra.mxu0 %v370
    %805 = vmatprep.subr.mxu0 %v375
    %806 = vmatpush1.msra.mxu0 %v374
    %807 = vmatprep.subr.mxu0 %v379
    %808 = vmatpush1.msra.mxu0 %v378
    %809 = vmatprep.subr.mxu0 %v383
    %810 = vmatpush1.msra.mxu0 %v382
    %811 = vmatprep.subr.mxu0 0.0
    %812 = vmatpush1.msra.mxu0 0.0
    %813 = vmatprep.subr.mxu0 0.0
    %814 = vmatpush1.msra.mxu0 0.0
    %815 = vmatprep.subr.mxu0 0.0
    %816 = vmatpush1.msra.mxu0 0.0
    %817 = vmatprep.subr.mxu0 0.0
    %818 = vmatpush1.msra.mxu0 0.0
    %819 = vmatprep.subr.mxu0 0.0
    %820 = vmatpush1.msra.mxu0 0.0
    %821 = vmatprep.subr.mxu0 0.0
    %822 = vmatpush1.msra.mxu0 0.0
    %823 = vmatprep.subr.mxu0 0.0
    %824 = vmatpush1.msra.mxu0 0.0
    %825 = vmatprep.subr.mxu0 0.0
    %826 = vmatpush1.msra.mxu0 0.0
    %827 = vmatprep.subr.mxu0 0.0
    %828 = vmatpush1.msra.mxu0 0.0
    %829 = vmatprep.subr.mxu0 0.0
    %830 = vmatpush1.msra.mxu0 0.0
    %831 = vmatprep.subr.mxu0 0.0
    %832 = vmatpush1.msra.mxu0 0.0
    %833 = vmatprep.subr.mxu0 0.0
    %834 = vmatpush1.msra.mxu0 0.0
    %835 = vmatprep.subr.mxu0 0.0
    %836 = vmatpush1.msra.mxu0 0.0
    %837 = vmatprep.subr.mxu0 0.0
    %838 = vmatpush1.msra.mxu0 0.0
    %839 = vmatprep.subr.mxu0 0.0
    %840 = vmatpush1.msra.mxu0 0.0
    %841 = vmatprep.subr.mxu0 0.0
    %842 = vmatpush1.msra.mxu0 0.0
    %843 = vmatprep.mubr.f32.mxu0 0.0
    %844 = vmatmul.mubr.f32.gmra.mrb[0].mxu0 %v758
    %v845 = vpop.f32.mrb[0].mxu0
    %v846 = vadd.f32 0.0, %v845
    %v847 = vpop.f32.mrb[0].mxu0
    %v848 = vadd.f32 0.0, %v847
    %849 = vdwg.mxu0
    %850 = vmatprep.subr.mxu0 %v325
    %851 = vmatpush1.msra.mxu0 %v324
    %852 = vmatprep.subr.mxu0 %v329
    %853 = vmatpush1.msra.mxu0 %v328
    %854 = vmatprep.subr.mxu0 %v333
    %855 = vmatpush1.msra.mxu0 %v332
    %856 = vmatprep.subr.mxu0 %v337
    %857 = vmatpush1.msra.mxu0 %v336
    %858 = vmatprep.subr.mxu0 %v341
    %859 = vmatpush1.msra.mxu0 %v340
    %860 = vmatprep.subr.mxu0 %v345
    %861 = vmatpush1.msra.mxu0 %v344
    %862 = vmatprep.subr.mxu0 %v349
    %863 = vmatpush1.msra.mxu0 %v348
    %864 = vmatprep.subr.mxu0 %v353
    %865 = vmatpush1.msra.mxu0 %v352
    %866 = vmatprep.subr.mxu0 %v357
    %867 = vmatpush1.msra.mxu0 %v356
    %868 = vmatprep.subr.mxu0 %v361
    %869 = vmatpush1.msra.mxu0 %v360
    %870 = vmatprep.subr.mxu0 %v365
    %871 = vmatpush1.msra.mxu0 %v364
    %872 = vmatprep.subr.mxu0 %v369
    %873 = vmatpush1.msra.mxu0 %v368
    %874 = vmatprep.subr.mxu0 %v373
    %875 = vmatpush1.msra.mxu0 %v372
    %876 = vmatprep.subr.mxu0 %v377
    %877 = vmatpush1.msra.mxu0 %v376
    %878 = vmatprep.subr.mxu0 %v381
    %879 = vmatpush1.msra.mxu0 %v380
    %880 = vmatprep.subr.mxu0 %v385
    %881 = vmatpush1.msra.mxu0 %v384
    %882 = vmatprep.subr.mxu0 0.0
    %883 = vmatpush1.msra.mxu0 0.0
    %884 = vmatprep.subr.mxu0 0.0
    %885 = vmatpush1.msra.mxu0 0.0
    %886 = vmatprep.subr.mxu0 0.0
    %887 = vmatpush1.msra.mxu0 0.0
    %888 = vmatprep.subr.mxu0 0.0
    %889 = vmatpush1.msra.mxu0 0.0
    %890 = vmatprep.subr.mxu0 0.0
    %891 = vmatpush1.msra.mxu0 0.0
    %892 = vmatprep.subr.mxu0 0.0
    %893 = vmatpush1.msra.mxu0 0.0
    %894 = vmatprep.subr.mxu0 0.0
    %895 = vmatpush1.msra.mxu0 0.0
    %896 = vmatprep.subr.mxu0 0.0
    %897 = vmatpush1.msra.mxu0 0.0
    %898 = vmatprep.subr.mxu0 0.0
    %899 = vmatpush1.msra.mxu0 0.0
    %900 = vmatprep.subr.mxu0 0.0
    %901 = vmatpush1.msra.mxu0 0.0
    %902 = vmatprep.subr.mxu0 0.0
    %903 = vmatpush1.msra.mxu0 0.0
    %904 = vmatprep.subr.mxu0 0.0
    %905 = vmatpush1.msra.mxu0 0.0
    %906 = vmatprep.subr.mxu0 0.0
    %907 = vmatpush1.msra.mxu0 0.0
    %908 = vmatprep.subr.mxu0 0.0
    %909 = vmatpush1.msra.mxu0 0.0
    %910 = vmatprep.subr.mxu0 0.0
    %911 = vmatpush1.msra.mxu0 0.0
    %912 = vmatprep.subr.mxu0 0.0
    %913 = vmatpush1.msra.mxu0 0.0
    %914 = vmatprep.mubr.f32.mxu0 0.0
    %915 = vmatmul.mubr.f32.gmra.mrb[0].mxu0 %v758
    %v916 = vpop.f32.mrb[0].mxu0
    %v917 = vadd.f32 0.0, %v916
    %v918 = vpop.f32.mrb[0].mxu0
    %v919 = vadd.f32 0.0, %v918
    %920 = vdwg.mxu0
    %v921 = vadd.f32 %v775, %v846
    %v922 = vadd.f32 %v776, %v848
    %v923 = vadd.f32 %v777, %v917
    %v924 = vadd.f32 %v778, %v919
    %v925 = vxor.u32 %v921, 2147483648
    %v926 = vxor.u32 %v922, 2147483648
    %v927 = vxor.u32 %v923, 2147483648
    %v928 = vmul.f32 %v925, 1.442695
    %v929 = vpow.pop %v928
    %v930 = vmul.f32 %v926, 1.442695
    %v931 = vpow.pop %v930
    %v932 = vmul.f32 %v927, 1.442695
    %v933 = vpow.pop %v932
    %v934 = vadd.f32 %v929, 1.0
    %v935 = vadd.f32 %v931, 1.0
    %v936 = vadd.f32 %v933, 1.0
    %v937 = vrcp.pop %v934
    %v938 = vmul.f32 1.0, %v937
    %v939 = vrcp.pop %v935
    %v940 = vmul.f32 1.0, %v939
    %v941 = vrcp.pop %v936
    %v942 = vmul.f32 1.0, %v941
    %v943 = vtanh.pop %v924
    %v944 = vmul.f32 %v940, %v756
    %v945 = vmul.f32 %v938, %v943
    %v946 = vadd.f32 %v944, %v945
    %v947 = vtanh.pop %v946
    %v948 = vmul.f32 %v942, %v947
    %v949 = vrot.slane %v235, 3
    %v950 = vrot.slane %v237, 3
    %v951 = vrot.slane %v312, 3
    %v952 = vrot.slane %v314, 3
    %v957 = vrot.slane %v241, 2
    %v958 = vrot.slane %v243, 2
    %v959 = vrot.slane %v318, 2
    %v960 = vrot.slane %v320, 2
    %v965 = vsel %vm398, %v949, %v957
    %v966 = vsel %vm398, %v950, %v958
    %v967 = vsel %vm398, %v951, %v959
    %v968 = vsel %vm398, %v952, %v960
    %969 = vmatprep.subr.mxu0 %v323
    %970 = vmatpush1.msra.mxu0 %v322
    %971 = vmatprep.subr.mxu0 %v327
    %972 = vmatpush1.msra.mxu0 %v326
    %973 = vmatprep.subr.mxu0 %v331
    %974 = vmatpush1.msra.mxu0 %v330
    %975 = vmatprep.subr.mxu0 %v335
    %976 = vmatpush1.msra.mxu0 %v334
    %977 = vmatprep.subr.mxu0 %v339
    %978 = vmatpush1.msra.mxu0 %v338
    %979 = vmatprep.subr.mxu0 %v343
    %980 = vmatpush1.msra.mxu0 %v342
    %981 = vmatprep.subr.mxu0 %v347
    %982 = vmatpush1.msra.mxu0 %v346
    %983 = vmatprep.subr.mxu0 %v351
    %984 = vmatpush1.msra.mxu0 %v350
    %985 = vmatprep.subr.mxu0 %v355
    %986 = vmatpush1.msra.mxu0 %v354
    %987 = vmatprep.subr.mxu0 %v359
    %988 = vmatpush1.msra.mxu0 %v358
    %989 = vmatprep.subr.mxu0 %v363
    %990 = vmatpush1.msra.mxu0 %v362
    %991 = vmatprep.subr.mxu0 %v367
    %992 = vmatpush1.msra.mxu0 %v366
    %993 = vmatprep.subr.mxu0 %v371
    %994 = vmatpush1.msra.mxu0 %v370
    %995 = vmatprep.subr.mxu0 %v375
    %996 = vmatpush1.msra.mxu0 %v374
    %997 = vmatprep.subr.mxu0 %v379
    %998 = vmatpush1.msra.mxu0 %v378
    %999 = vmatprep.subr.mxu0 %v383
    %1000 = vmatpush1.msra.mxu0 %v382
    %1001 = vmatprep.subr.mxu0 0.0
    %1002 = vmatpush1.msra.mxu0 0.0
    %1003 = vmatprep.subr.mxu0 0.0
    %1004 = vmatpush1.msra.mxu0 0.0
    %1005 = vmatprep.subr.mxu0 0.0
    %1006 = vmatpush1.msra.mxu0 0.0
    %1007 = vmatprep.subr.mxu0 0.0
    %1008 = vmatpush1.msra.mxu0 0.0
    %1009 = vmatprep.subr.mxu0 0.0
    %1010 = vmatpush1.msra.mxu0 0.0
    %1011 = vmatprep.subr.mxu0 0.0
    %1012 = vmatpush1.msra.mxu0 0.0
    %1013 = vmatprep.subr.mxu0 0.0
    %1014 = vmatpush1.msra.mxu0 0.0
    %1015 = vmatprep.subr.mxu0 0.0
    %1016 = vmatpush1.msra.mxu0 0.0
    %1017 = vmatprep.subr.mxu0 0.0
    %1018 = vmatpush1.msra.mxu0 0.0
    %1019 = vmatprep.subr.mxu0 0.0
    %1020 = vmatpush1.msra.mxu0 0.0
    %1021 = vmatprep.subr.mxu0 0.0
    %1022 = vmatpush1.msra.mxu0 0.0
    %1023 = vmatprep.subr.mxu0 0.0
    %1024 = vmatpush1.msra.mxu0 0.0
    %1025 = vmatprep.subr.mxu0 0.0
    %1026 = vmatpush1.msra.mxu0 0.0
    %1027 = vmatprep.subr.mxu0 0.0
    %1028 = vmatpush1.msra.mxu0 0.0
    %1029 = vmatprep.subr.mxu0 0.0
    %1030 = vmatpush1.msra.mxu0 0.0
    %1031 = vmatprep.subr.mxu0 0.0
    %1032 = vmatpush1.msra.mxu0 0.0
    %1033 = vmatprep.mubr.f32.mxu0 0.0
    %1034 = vmatmul.mubr.f32.gmra.mrb[0].mxu0 %v948
    %v1035 = vpop.f32.mrb[0].mxu0
    %v1036 = vadd.f32 0.0, %v1035
    %v1037 = vpop.f32.mrb[0].mxu0
    %v1038 = vadd.f32 0.0, %v1037
    %1039 = vdwg.mxu0
    %1040 = vmatprep.subr.mxu0 %v325
    %1041 = vmatpush1.msra.mxu0 %v324
    %1042 = vmatprep.subr.mxu0 %v329
    %1043 = vmatpush1.msra.mxu0 %v328
    %1044 = vmatprep.subr.mxu0 %v333
    %1045 = vmatpush1.msra.mxu0 %v332
    %1046 = vmatprep.subr.mxu0 %v337
    %1047 = vmatpush1.msra.mxu0 %v336
    %1048 = vmatprep.subr.mxu0 %v341
    %1049 = vmatpush1.msra.mxu0 %v340
    %1050 = vmatprep.subr.mxu0 %v345
    %1051 = vmatpush1.msra.mxu0 %v344
    %1052 = vmatprep.subr.mxu0 %v349
    %1053 = vmatpush1.msra.mxu0 %v348
    %1054 = vmatprep.subr.mxu0 %v353
    %1055 = vmatpush1.msra.mxu0 %v352
    %1056 = vmatprep.subr.mxu0 %v357
    %1057 = vmatpush1.msra.mxu0 %v356
    %1058 = vmatprep.subr.mxu0 %v361
    %1059 = vmatpush1.msra.mxu0 %v360
    %1060 = vmatprep.subr.mxu0 %v365
    %1061 = vmatpush1.msra.mxu0 %v364
    %1062 = vmatprep.subr.mxu0 %v369
    %1063 = vmatpush1.msra.mxu0 %v368
    %1064 = vmatprep.subr.mxu0 %v373
    %1065 = vmatpush1.msra.mxu0 %v372
    %1066 = vmatprep.subr.mxu0 %v377
    %1067 = vmatpush1.msra.mxu0 %v376
    %1068 = vmatprep.subr.mxu0 %v381
    %1069 = vmatpush1.msra.mxu0 %v380
    %1070 = vmatprep.subr.mxu0 %v385
    %1071 = vmatpush1.msra.mxu0 %v384
    %1072 = vmatprep.subr.mxu0 0.0
    %1073 = vmatpush1.msra.mxu0 0.0
    %1074 = vmatprep.subr.mxu0 0.0
    %1075 = vmatpush1.msra.mxu0 0.0
    %1076 = vmatprep.subr.mxu0 0.0
    %1077 = vmatpush1.msra.mxu0 0.0
    %1078 = vmatprep.subr.mxu0 0.0
    %1079 = vmatpush1.msra.mxu0 0.0
    %1080 = vmatprep.subr.mxu0 0.0
    %1081 = vmatpush1.msra.mxu0 0.0
    %1082 = vmatprep.subr.mxu0 0.0
    %1083 = vmatpush1.msra.mxu0 0.0
    %1084 = vmatprep.subr.mxu0 0.0
    %1085 = vmatpush1.msra.mxu0 0.0
    %1086 = vmatprep.subr.mxu0 0.0
    %1087 = vmatpush1.msra.mxu0 0.0
    %1088 = vmatprep.subr.mxu0 0.0
    %1089 = vmatpush1.msra.mxu0 0.0
    %1090 = vmatprep.subr.mxu0 0.0
    %1091 = vmatpush1.msra.mxu0 0.0
    %1092 = vmatprep.subr.mxu0 0.0
    %1093 = vmatpush1.msra.mxu0 0.0
    %1094 = vmatprep.subr.mxu0 0.0
    %1095 = vmatpush1.msra.mxu0 0.0
    %1096 = vmatprep.subr.mxu0 0.0
    %1097 = vmatpush1.msra.mxu0 0.0
    %1098 = vmatprep.subr.mxu0 0.0
    %1099 = vmatpush1.msra.mxu0 0.0
    %1100 = vmatprep.subr.mxu0 0.0
    %1101 = vmatpush1.msra.mxu0 0.0
    %1102 = vmatprep.subr.mxu0 0.0
    %1103 = vmatpush1.msra.mxu0 0.0
    %1104 = vmatprep.mubr.f32.mxu0 0.0
    %1105 = vmatmul.mubr.f32.gmra.mrb[0].mxu0 %v948
    %v1106 = vpop.f32.mrb[0].mxu0
    %v1107 = vadd.f32 0.0, %v1106
    %v1108 = vpop.f32.mrb[0].mxu0
    %v1109 = vadd.f32 0.0, %v1108
    %1110 = vdwg.mxu0
    %v1111 = vadd.f32 %v965, %v1036
    %v1112 = vadd.f32 %v966, %v1038
    %v1113 = vadd.f32 %v967, %v1107
    %v1114 = vadd.f32 %v968, %v1109
    %v1115 = vxor.u32 %v1111, 2147483648
    %v1116 = vxor.u32 %v1112, 2147483648
    %v1117 = vxor.u32 %v1113, 2147483648
    %v1118 = vmul.f32 %v1115, 1.442695
    %v1119 = vpow.pop %v1118
    %v1120 = vmul.f32 %v1116, 1.442695
    %v1121 = vpow.pop %v1120
    %v1122 = vmul.f32 %v1117, 1.442695
    %v1123 = vpow.pop %v1122
    %v1124 = vadd.f32 %v1119, 1.0
    %v1125 = vadd.f32 %v1121, 1.0
    %v1126 = vadd.f32 %v1123, 1.0
    %v1127 = vrcp.pop %v1124
    %v1128 = vmul.f32 1.0, %v1127
    %v1129 = vrcp.pop %v1125
    %v1130 = vmul.f32 1.0, %v1129
    %v1131 = vrcp.pop %v1126
    %v1132 = vmul.f32 1.0, %v1131
    %v1133 = vtanh.pop %v1114
    %v1134 = vmul.f32 %v1130, %v946
    %v1135 = vmul.f32 %v1128, %v1133
    %v1136 = vadd.f32 %v1134, %v1135
    %v1137 = vtanh.pop %v1136
    %v1138 = vmul.f32 %v1132, %v1137
    %v1139 = vrot.slane %v235, 4
    %v1140 = vrot.slane %v237, 4
    %v1141 = vrot.slane %v312, 4
    %v1142 = vrot.slane %v314, 4
    %v1147 = vrot.slane %v241, 3
    %v1148 = vrot.slane %v243, 3
    %v1149 = vrot.slane %v318, 3
    %v1150 = vrot.slane %v320, 3
    %v1155 = vsel %vm398, %v1139, %v1147
    %v1156 = vsel %vm398, %v1140, %v1148
    %v1157 = vsel %vm398, %v1141, %v1149
    %v1158 = vsel %vm398, %v1142, %v1150
    %1159 = vmatprep.subr.mxu0 %v323
    %1160 = vmatpush1.msra.mxu0 %v322
    %1161 = vmatprep.subr.mxu0 %v327
    %1162 = vmatpush1.msra.mxu0 %v326
    %1163 = vmatprep.subr.mxu0 %v331
    %1164 = vmatpush1.msra.mxu0 %v330
    %1165 = vmatprep.subr.mxu0 %v335
    %1166 = vmatpush1.msra.mxu0 %v334
    %1167 = vmatprep.subr.mxu0 %v339
    %1168 = vmatpush1.msra.mxu0 %v338
    %1169 = vmatprep.subr.mxu0 %v343
    %1170 = vmatpush1.msra.mxu0 %v342
    %1171 = vmatprep.subr.mxu0 %v347
    %1172 = vmatpush1.msra.mxu0 %v346
    %1173 = vmatprep.subr.mxu0 %v351
    %1174 = vmatpush1.msra.mxu0 %v350
    %1175 = vmatprep.subr.mxu0 %v355
    %1176 = vmatpush1.msra.mxu0 %v354
    %1177 = vmatprep.subr.mxu0 %v359
    %1178 = vmatpush1.msra.mxu0 %v358
    %1179 = vmatprep.subr.mxu0 %v363
    %1180 = vmatpush1.msra.mxu0 %v362
    %1181 = vmatprep.subr.mxu0 %v367
    %1182 = vmatpush1.msra.mxu0 %v366
    %1183 = vmatprep.subr.mxu0 %v371
    %1184 = vmatpush1.msra.mxu0 %v370
    %1185 = vmatprep.subr.mxu0 %v375
    %1186 = vmatpush1.msra.mxu0 %v374
    %1187 = vmatprep.subr.mxu0 %v379
    %1188 = vmatpush1.msra.mxu0 %v378
    %1189 = vmatprep.subr.mxu0 %v383
    %1190 = vmatpush1.msra.mxu0 %v382
    %1191 = vmatprep.subr.mxu0 0.0
    %1192 = vmatpush1.msra.mxu0 0.0
    %1193 = vmatprep.subr.mxu0 0.0
    %1194 = vmatpush1.msra.mxu0 0.0
    %1195 = vmatprep.subr.mxu0 0.0
    %1196 = vmatpush1.msra.mxu0 0.0
    %1197 = vmatprep.subr.mxu0 0.0
    %1198 = vmatpush1.msra.mxu0 0.0
    %1199 = vmatprep.subr.mxu0 0.0
    %1200 = vmatpush1.msra.mxu0 0.0
    %1201 = vmatprep.subr.mxu0 0.0
    %1202 = vmatpush1.msra.mxu0 0.0
    %1203 = vmatprep.subr.mxu0 0.0
    %1204 = vmatpush1.msra.mxu0 0.0
    %1205 = vmatprep.subr.mxu0 0.0
    %1206 = vmatpush1.msra.mxu0 0.0
    %1207 = vmatprep.subr.mxu0 0.0
    %1208 = vmatpush1.msra.mxu0 0.0
    %1209 = vmatprep.subr.mxu0 0.0
    %1210 = vmatpush1.msra.mxu0 0.0
    %1211 = vmatprep.subr.mxu0 0.0
    %1212 = vmatpush1.msra.mxu0 0.0
    %1213 = vmatprep.subr.mxu0 0.0
    %1214 = vmatpush1.msra.mxu0 0.0
    %1215 = vmatprep.subr.mxu0 0.0
    %1216 = vmatpush1.msra.mxu0 0.0
    %1217 = vmatprep.subr.mxu0 0.0
    %1218 = vmatpush1.msra.mxu0 0.0
    %1219 = vmatprep.subr.mxu0 0.0
    %1220 = vmatpush1.msra.mxu0 0.0
    %1221 = vmatprep.subr.mxu0 0.0
    %1222 = vmatpush1.msra.mxu0 0.0
    %1223 = vmatprep.mubr.f32.mxu0 0.0
    %1224 = vmatmul.mubr.f32.gmra.mrb[0].mxu0 %v1138
    %v1225 = vpop.f32.mrb[0].mxu0
    %v1226 = vadd.f32 0.0, %v1225
    %v1227 = vpop.f32.mrb[0].mxu0
    %v1228 = vadd.f32 0.0, %v1227
    %1229 = vdwg.mxu0
    %1230 = vmatprep.subr.mxu0 %v325
    %1231 = vmatpush1.msra.mxu0 %v324
    %1232 = vmatprep.subr.mxu0 %v329
    %1233 = vmatpush1.msra.mxu0 %v328
    %1234 = vmatprep.subr.mxu0 %v333
    %1235 = vmatpush1.msra.mxu0 %v332
    %1236 = vmatprep.subr.mxu0 %v337
    %1237 = vmatpush1.msra.mxu0 %v336
    %1238 = vmatprep.subr.mxu0 %v341
    %1239 = vmatpush1.msra.mxu0 %v340
    %1240 = vmatprep.subr.mxu0 %v345
    %1241 = vmatpush1.msra.mxu0 %v344
    %1242 = vmatprep.subr.mxu0 %v349
    %1243 = vmatpush1.msra.mxu0 %v348
    %1244 = vmatprep.subr.mxu0 %v353
    %1245 = vmatpush1.msra.mxu0 %v352
    %1246 = vmatprep.subr.mxu0 %v357
    %1247 = vmatpush1.msra.mxu0 %v356
    %1248 = vmatprep.subr.mxu0 %v361
    %1249 = vmatpush1.msra.mxu0 %v360
    %1250 = vmatprep.subr.mxu0 %v365
    %1251 = vmatpush1.msra.mxu0 %v364
    %1252 = vmatprep.subr.mxu0 %v369
    %1253 = vmatpush1.msra.mxu0 %v368
    %1254 = vmatprep.subr.mxu0 %v373
    %1255 = vmatpush1.msra.mxu0 %v372
    %1256 = vmatprep.subr.mxu0 %v377
    %1257 = vmatpush1.msra.mxu0 %v376
    %1258 = vmatprep.subr.mxu0 %v381
    %1259 = vmatpush1.msra.mxu0 %v380
    %1260 = vmatprep.subr.mxu0 %v385
    %1261 = vmatpush1.msra.mxu0 %v384
    %1262 = vmatprep.subr.mxu0 0.0
    %1263 = vmatpush1.msra.mxu0 0.0
    %1264 = vmatprep.subr.mxu0 0.0
    %1265 = vmatpush1.msra.mxu0 0.0
    %1266 = vmatprep.subr.mxu0 0.0
    %1267 = vmatpush1.msra.mxu0 0.0
    %1268 = vmatprep.subr.mxu0 0.0
    %1269 = vmatpush1.msra.mxu0 0.0
    %1270 = vmatprep.subr.mxu0 0.0
    %1271 = vmatpush1.msra.mxu0 0.0
    %1272 = vmatprep.subr.mxu0 0.0
    %1273 = vmatpush1.msra.mxu0 0.0
    %1274 = vmatprep.subr.mxu0 0.0
    %1275 = vmatpush1.msra.mxu0 0.0
    %1276 = vmatprep.subr.mxu0 0.0
    %1277 = vmatpush1.msra.mxu0 0.0
    %1278 = vmatprep.subr.mxu0 0.0
    %1279 = vmatpush1.msra.mxu0 0.0
    %1280 = vmatprep.subr.mxu0 0.0
    %1281 = vmatpush1.msra.mxu0 0.0
    %1282 = vmatprep.subr.mxu0 0.0
    %1283 = vmatpush1.msra.mxu0 0.0
    %1284 = vmatprep.subr.mxu0 0.0
    %1285 = vmatpush1.msra.mxu0 0.0
    %1286 = vmatprep.subr.mxu0 0.0
    %1287 = vmatpush1.msra.mxu0 0.0
    %1288 = vmatprep.subr.mxu0 0.0
    %1289 = vmatpush1.msra.mxu0 0.0
    %1290 = vmatprep.subr.mxu0 0.0
    %1291 = vmatpush1.msra.mxu0 0.0
    %1292 = vmatprep.subr.mxu0 0.0
    %1293 = vmatpush1.msra.mxu0 0.0
    %1294 = vmatprep.mubr.f32.mxu0 0.0
    %1295 = vmatmul.mubr.f32.gmra.mrb[0].mxu0 %v1138
    %v1296 = vpop.f32.mrb[0].mxu0
    %v1297 = vadd.f32 0.0, %v1296
    %v1298 = vpop.f32.mrb[0].mxu0
    %v1299 = vadd.f32 0.0, %v1298
    %1300 = vdwg.mxu0
    %v1301 = vadd.f32 %v1155, %v1226
    %v1302 = vadd.f32 %v1156, %v1228
    %v1303 = vadd.f32 %v1157, %v1297
    %v1304 = vadd.f32 %v1158, %v1299
    %v1305 = vxor.u32 %v1301, 2147483648
    %v1306 = vxor.u32 %v1302, 2147483648
    %v1307 = vxor.u32 %v1303, 2147483648
    %v1308 = vmul.f32 %v1305, 1.442695
    %v1309 = vpow.pop %v1308
    %v1310 = vmul.f32 %v1306, 1.442695
    %v1311 = vpow.pop %v1310
    %v1312 = vmul.f32 %v1307, 1.442695
    %v1313 = vpow.pop %v1312
    %v1314 = vadd.f32 %v1309, 1.0
    %v1315 = vadd.f32 %v1311, 1.0
    %v1316 = vadd.f32 %v1313, 1.0
    %v1317 = vrcp.pop %v1314
    %v1318 = vmul.f32 1.0, %v1317
    %v1319 = vrcp.pop %v1315
    %v1320 = vmul.f32 1.0, %v1319
    %v1321 = vrcp.pop %v1316
    %v1322 = vmul.f32 1.0, %v1321
    %v1323 = vtanh.pop %v1304
    %v1324 = vmul.f32 %v1320, %v1136
    %v1325 = vmul.f32 %v1318, %v1323
    %v1326 = vadd.f32 %v1324, %v1325
    %v1327 = vtanh.pop %v1326
    %v1328 = vmul.f32 %v1322, %v1327
    %v1329 = vrot.slane %v235, 5
    %v1330 = vrot.slane %v237, 5
    %v1331 = vrot.slane %v312, 5
    %v1332 = vrot.slane %v314, 5
    %v1337 = vrot.slane %v241, 4
    %v1338 = vrot.slane %v243, 4
    %v1339 = vrot.slane %v318, 4
    %v1340 = vrot.slane %v320, 4
    %v1345 = vsel %vm398, %v1329, %v1337
    %v1346 = vsel %vm398, %v1330, %v1338
    %v1347 = vsel %vm398, %v1331, %v1339
    %v1348 = vsel %vm398, %v1332, %v1340
    %1349 = vmatprep.subr.mxu0 %v323
    %1350 = vmatpush1.msra.mxu0 %v322
    %1351 = vmatprep.subr.mxu0 %v327
    %1352 = vmatpush1.msra.mxu0 %v326
    %1353 = vmatprep.subr.mxu0 %v331
    %1354 = vmatpush1.msra.mxu0 %v330
    %1355 = vmatprep.subr.mxu0 %v335
    %1356 = vmatpush1.msra.mxu0 %v334
    %1357 = vmatprep.subr.mxu0 %v339
    %1358 = vmatpush1.msra.mxu0 %v338
    %1359 = vmatprep.subr.mxu0 %v343
    %1360 = vmatpush1.msra.mxu0 %v342
    %1361 = vmatprep.subr.mxu0 %v347
    %1362 = vmatpush1.msra.mxu0 %v346
    %1363 = vmatprep.subr.mxu0 %v351
    %1364 = vmatpush1.msra.mxu0 %v350
    %1365 = vmatprep.subr.mxu0 %v355
    %1366 = vmatpush1.msra.mxu0 %v354
    %1367 = vmatprep.subr.mxu0 %v359
    %1368 = vmatpush1.msra.mxu0 %v358
    %1369 = vmatprep.subr.mxu0 %v363
    %1370 = vmatpush1.msra.mxu0 %v362
    %1371 = vmatprep.subr.mxu0 %v367
    %1372 = vmatpush1.msra.mxu0 %v366
    %1373 = vmatprep.subr.mxu0 %v371
    %1374 = vmatpush1.msra.mxu0 %v370
    %1375 = vmatprep.subr.mxu0 %v375
    %1376 = vmatpush1.msra.mxu0 %v374
    %1377 = vmatprep.subr.mxu0 %v379
    %1378 = vmatpush1.msra.mxu0 %v378
    %1379 = vmatprep.subr.mxu0 %v383
    %1380 = vmatpush1.msra.mxu0 %v382
    %1381 = vmatprep.subr.mxu0 0.0
    %1382 = vmatpush1.msra.mxu0 0.0
    %1383 = vmatprep.subr.mxu0 0.0
    %1384 = vmatpush1.msra.mxu0 0.0
    %1385 = vmatprep.subr.mxu0 0.0
    %1386 = vmatpush1.msra.mxu0 0.0
    %1387 = vmatprep.subr.mxu0 0.0
    %1388 = vmatpush1.msra.mxu0 0.0
    %1389 = vmatprep.subr.mxu0 0.0
    %1390 = vmatpush1.msra.mxu0 0.0
    %1391 = vmatprep.subr.mxu0 0.0
    %1392 = vmatpush1.msra.mxu0 0.0
    %1393 = vmatprep.subr.mxu0 0.0
    %1394 = vmatpush1.msra.mxu0 0.0
    %1395 = vmatprep.subr.mxu0 0.0
    %1396 = vmatpush1.msra.mxu0 0.0
    %1397 = vmatprep.subr.mxu0 0.0
    %1398 = vmatpush1.msra.mxu0 0.0
    %1399 = vmatprep.subr.mxu0 0.0
    %1400 = vmatpush1.msra.mxu0 0.0
    %1401 = vmatprep.subr.mxu0 0.0
    %1402 = vmatpush1.msra.mxu0 0.0
    %1403 = vmatprep.subr.mxu0 0.0
    %1404 = vmatpush1.msra.mxu0 0.0
    %1405 = vmatprep.subr.mxu0 0.0
    %1406 = vmatpush1.msra.mxu0 0.0
    %1407 = vmatprep.subr.mxu0 0.0
    %1408 = vmatpush1.msra.mxu0 0.0
    %1409 = vmatprep.subr.mxu0 0.0
    %1410 = vmatpush1.msra.mxu0 0.0
    %1411 = vmatprep.subr.mxu0 0.0
    %1412 = vmatpush1.msra.mxu0 0.0
    %1413 = vmatprep.mubr.f32.mxu0 0.0
    %1414 = vmatmul.mubr.f32.gmra.mrb[0].mxu0 %v1328
    %v1415 = vpop.f32.mrb[0].mxu0
    %v1416 = vadd.f32 0.0, %v1415
    %v1417 = vpop.f32.mrb[0].mxu0
    %v1418 = vadd.f32 0.0, %v1417
    %1419 = vdwg.mxu0
    %1420 = vmatprep.subr.mxu0 %v325
    %1421 = vmatpush1.msra.mxu0 %v324
    %1422 = vmatprep.subr.mxu0 %v329
    %1423 = vmatpush1.msra.mxu0 %v328
    %1424 = vmatprep.subr.mxu0 %v333
    %1425 = vmatpush1.msra.mxu0 %v332
    %1426 = vmatprep.subr.mxu0 %v337
    %1427 = vmatpush1.msra.mxu0 %v336
    %1428 = vmatprep.subr.mxu0 %v341
    %1429 = vmatpush1.msra.mxu0 %v340
    %1430 = vmatprep.subr.mxu0 %v345
    %1431 = vmatpush1.msra.mxu0 %v344
    %1432 = vmatprep.subr.mxu0 %v349
    %1433 = vmatpush1.msra.mxu0 %v348
    %1434 = vmatprep.subr.mxu0 %v353
    %1435 = vmatpush1.msra.mxu0 %v352
    %1436 = vmatprep.subr.mxu0 %v357
    %1437 = vmatpush1.msra.mxu0 %v356
    %1438 = vmatprep.subr.mxu0 %v361
    %1439 = vmatpush1.msra.mxu0 %v360
    %1440 = vmatprep.subr.mxu0 %v365
    %1441 = vmatpush1.msra.mxu0 %v364
    %1442 = vmatprep.subr.mxu0 %v369
    %1443 = vmatpush1.msra.mxu0 %v368
    %1444 = vmatprep.subr.mxu0 %v373
    %1445 = vmatpush1.msra.mxu0 %v372
    %1446 = vmatprep.subr.mxu0 %v377
    %1447 = vmatpush1.msra.mxu0 %v376
    %1448 = vmatprep.subr.mxu0 %v381
    %1449 = vmatpush1.msra.mxu0 %v380
    %1450 = vmatprep.subr.mxu0 %v385
    %1451 = vmatpush1.msra.mxu0 %v384
    %1452 = vmatprep.subr.mxu0 0.0
    %1453 = vmatpush1.msra.mxu0 0.0
    %1454 = vmatprep.subr.mxu0 0.0
    %1455 = vmatpush1.msra.mxu0 0.0
    %1456 = vmatprep.subr.mxu0 0.0
    %1457 = vmatpush1.msra.mxu0 0.0
    %1458 = vmatprep.subr.mxu0 0.0
    %1459 = vmatpush1.msra.mxu0 0.0
    %1460 = vmatprep.subr.mxu0 0.0
    %1461 = vmatpush1.msra.mxu0 0.0
    %1462 = vmatprep.subr.mxu0 0.0
    %1463 = vmatpush1.msra.mxu0 0.0
    %1464 = vmatprep.subr.mxu0 0.0
    %1465 = vmatpush1.msra.mxu0 0.0
    %1466 = vmatprep.subr.mxu0 0.0
    %1467 = vmatpush1.msra.mxu0 0.0
    %1468 = vmatprep.subr.mxu0 0.0
    %1469 = vmatpush1.msra.mxu0 0.0
    %1470 = vmatprep.subr.mxu0 0.0
    %1471 = vmatpush1.msra.mxu0 0.0
    %1472 = vmatprep.subr.mxu0 0.0
    %1473 = vmatpush1.msra.mxu0 0.0
    %1474 = vmatprep.subr.mxu0 0.0
    %1475 = vmatpush1.msra.mxu0 0.0
    %1476 = vmatprep.subr.mxu0 0.0
    %1477 = vmatpush1.msra.mxu0 0.0
    %1478 = vmatprep.subr.mxu0 0.0
    %1479 = vmatpush1.msra.mxu0 0.0
    %1480 = vmatprep.subr.mxu0 0.0
    %1481 = vmatpush1.msra.mxu0 0.0
    %1482 = vmatprep.subr.mxu0 0.0
    %1483 = vmatpush1.msra.mxu0 0.0
    %1484 = vmatprep.mubr.f32.mxu0 0.0
    %1485 = vmatmul.mubr.f32.gmra.mrb[0].mxu0 %v1328
    %v1486 = vpop.f32.mrb[0].mxu0
    %v1487 = vadd.f32 0.0, %v1486
    %v1488 = vpop.f32.mrb[0].mxu0
    %v1489 = vadd.f32 0.0, %v1488
    %1490 = vdwg.mxu0
    %v1491 = vadd.f32 %v1345, %v1416
    %v1492 = vadd.f32 %v1346, %v1418
    %v1493 = vadd.f32 %v1347, %v1487
    %v1494 = vadd.f32 %v1348, %v1489
    %v1495 = vxor.u32 %v1491, 2147483648
    %v1496 = vxor.u32 %v1492, 2147483648
    %v1497 = vxor.u32 %v1493, 2147483648
    %v1498 = vmul.f32 %v1495, 1.442695
    %v1499 = vpow.pop %v1498
    %v1500 = vmul.f32 %v1496, 1.442695
    %v1501 = vpow.pop %v1500
    %v1502 = vmul.f32 %v1497, 1.442695
    %v1503 = vpow.pop %v1502
    %v1504 = vadd.f32 %v1499, 1.0
    %v1505 = vadd.f32 %v1501, 1.0
    %v1506 = vadd.f32 %v1503, 1.0
    %v1507 = vrcp.pop %v1504
    %v1508 = vmul.f32 1.0, %v1507
    %v1509 = vrcp.pop %v1505
    %v1510 = vmul.f32 1.0, %v1509
    %v1511 = vrcp.pop %v1506
    %v1512 = vmul.f32 1.0, %v1511
    %v1513 = vtanh.pop %v1494
    %v1514 = vmul.f32 %v1510, %v1326
    %v1515 = vmul.f32 %v1508, %v1513
    %v1516 = vadd.f32 %v1514, %v1515
    %v1517 = vtanh.pop %v1516
    %v1518 = vmul.f32 %v1512, %v1517
    %v1519 = vrot.slane %v235, 6
    %v1520 = vrot.slane %v237, 6
    %v1521 = vrot.slane %v312, 6
    %v1522 = vrot.slane %v314, 6
    %v1527 = vrot.slane %v241, 5
    %v1528 = vrot.slane %v243, 5
    %v1529 = vrot.slane %v318, 5
    %v1530 = vrot.slane %v320, 5
    %v1535 = vsel %vm398, %v1519, %v1527
    %v1536 = vsel %vm398, %v1520, %v1528
    %v1537 = vsel %vm398, %v1521, %v1529
    %v1538 = vsel %vm398, %v1522, %v1530
    %1539 = vmatprep.subr.mxu0 %v323
    %1540 = vmatpush1.msra.mxu0 %v322
    %1541 = vmatprep.subr.mxu0 %v327
    %1542 = vmatpush1.msra.mxu0 %v326
    %1543 = vmatprep.subr.mxu0 %v331
    %1544 = vmatpush1.msra.mxu0 %v330
    %1545 = vmatprep.subr.mxu0 %v335
    %1546 = vmatpush1.msra.mxu0 %v334
    %1547 = vmatprep.subr.mxu0 %v339
    %1548 = vmatpush1.msra.mxu0 %v338
    %1549 = vmatprep.subr.mxu0 %v343
    %1550 = vmatpush1.msra.mxu0 %v342
    %1551 = vmatprep.subr.mxu0 %v347
    %1552 = vmatpush1.msra.mxu0 %v346
    %1553 = vmatprep.subr.mxu0 %v351
    %1554 = vmatpush1.msra.mxu0 %v350
    %1555 = vmatprep.subr.mxu0 %v355
    %1556 = vmatpush1.msra.mxu0 %v354
    %1557 = vmatprep.subr.mxu0 %v359
    %1558 = vmatpush1.msra.mxu0 %v358
    %1559 = vmatprep.subr.mxu0 %v363
    %1560 = vmatpush1.msra.mxu0 %v362
    %1561 = vmatprep.subr.mxu0 %v367
    %1562 = vmatpush1.msra.mxu0 %v366
    %1563 = vmatprep.subr.mxu0 %v371
    %1564 = vmatpush1.msra.mxu0 %v370
    %1565 = vmatprep.subr.mxu0 %v375
    %1566 = vmatpush1.msra.mxu0 %v374
    %1567 = vmatprep.subr.mxu0 %v379
    %1568 = vmatpush1.msra.mxu0 %v378
    %1569 = vmatprep.subr.mxu0 %v383
    %1570 = vmatpush1.msra.mxu0 %v382
    %1571 = vmatprep.subr.mxu0 0.0
    %1572 = vmatpush1.msra.mxu0 0.0
    %1573 = vmatprep.subr.mxu0 0.0
    %1574 = vmatpush1.msra.mxu0 0.0
    %1575 = vmatprep.subr.mxu0 0.0
    %1576 = vmatpush1.msra.mxu0 0.0
    %1577 = vmatprep.subr.mxu0 0.0
    %1578 = vmatpush1.msra.mxu0 0.0
    %1579 = vmatprep.subr.mxu0 0.0
    %1580 = vmatpush1.msra.mxu0 0.0
    %1581 = vmatprep.subr.mxu0 0.0
    %1582 = vmatpush1.msra.mxu0 0.0
    %1583 = vmatprep.subr.mxu0 0.0
    %1584 = vmatpush1.msra.mxu0 0.0
    %1585 = vmatprep.subr.mxu0 0.0
    %1586 = vmatpush1.msra.mxu0 0.0
    %1587 = vmatprep.subr.mxu0 0.0
    %1588 = vmatpush1.msra.mxu0 0.0
    %1589 = vmatprep.subr.mxu0 0.0
    %1590 = vmatpush1.msra.mxu0 0.0
    %1591 = vmatprep.subr.mxu0 0.0
    %1592 = vmatpush1.msra.mxu0 0.0
    %1593 = vmatprep.subr.mxu0 0.0
    %1594 = vmatpush1.msra.mxu0 0.0
    %1595 = vmatprep.subr.mxu0 0.0
    %1596 = vmatpush1.msra.mxu0 0.0
    %1597 = vmatprep.subr.mxu0 0.0
    %1598 = vmatpush1.msra.mxu0 0.0
    %1599 = vmatprep.subr.mxu0 0.0
    %1600 = vmatpush1.msra.mxu0 0.0
    %1601 = vmatprep.subr.mxu0 0.0
    %1602 = vmatpush1.msra.mxu0 0.0
    %1603 = vmatprep.mubr.f32.mxu0 0.0
    %1604 = vmatmul.mubr.f32.gmra.mrb[0].mxu0 %v1518
    %v1605 = vpop.f32.mrb[0].mxu0
    %v1606 = vadd.f32 0.0, %v1605
    %v1607 = vpop.f32.mrb[0].mxu0
    %v1608 = vadd.f32 0.0, %v1607
    %1609 = vdwg.mxu0
    %1610 = vmatprep.subr.mxu0 %v325
    %1611 = vmatpush1.msra.mxu0 %v324
    %1612 = vmatprep.subr.mxu0 %v329
    %1613 = vmatpush1.msra.mxu0 %v328
    %1614 = vmatprep.subr.mxu0 %v333
    %1615 = vmatpush1.msra.mxu0 %v332
    %1616 = vmatprep.subr.mxu0 %v337
    %1617 = vmatpush1.msra.mxu0 %v336
    %1618 = vmatprep.subr.mxu0 %v341
    %1619 = vmatpush1.msra.mxu0 %v340
    %1620 = vmatprep.subr.mxu0 %v345
    %1621 = vmatpush1.msra.mxu0 %v344
    %1622 = vmatprep.subr.mxu0 %v349
    %1623 = vmatpush1.msra.mxu0 %v348
    %1624 = vmatprep.subr.mxu0 %v353
    %1625 = vmatpush1.msra.mxu0 %v352
    %1626 = vmatprep.subr.mxu0 %v357
    %1627 = vmatpush1.msra.mxu0 %v356
    %1628 = vmatprep.subr.mxu0 %v361
    %1629 = vmatpush1.msra.mxu0 %v360
    %1630 = vmatprep.subr.mxu0 %v365
    %1631 = vmatpush1.msra.mxu0 %v364
    %1632 = vmatprep.subr.mxu0 %v369
    %1633 = vmatpush1.msra.mxu0 %v368
    %1634 = vmatprep.subr.mxu0 %v373
    %1635 = vmatpush1.msra.mxu0 %v372
    %1636 = vmatprep.subr.mxu0 %v377
    %1637 = vmatpush1.msra.mxu0 %v376
    %1638 = vmatprep.subr.mxu0 %v381
    %1639 = vmatpush1.msra.mxu0 %v380
    %1640 = vmatprep.subr.mxu0 %v385
    %1641 = vmatpush1.msra.mxu0 %v384
    %1642 = vmatprep.subr.mxu0 0.0
    %1643 = vmatpush1.msra.mxu0 0.0
    %1644 = vmatprep.subr.mxu0 0.0
    %1645 = vmatpush1.msra.mxu0 0.0
    %1646 = vmatprep.subr.mxu0 0.0
    %1647 = vmatpush1.msra.mxu0 0.0
    %1648 = vmatprep.subr.mxu0 0.0
    %1649 = vmatpush1.msra.mxu0 0.0
    %1650 = vmatprep.subr.mxu0 0.0
    %1651 = vmatpush1.msra.mxu0 0.0
    %1652 = vmatprep.subr.mxu0 0.0
    %1653 = vmatpush1.msra.mxu0 0.0
    %1654 = vmatprep.subr.mxu0 0.0
    %1655 = vmatpush1.msra.mxu0 0.0
    %1656 = vmatprep.subr.mxu0 0.0
    %1657 = vmatpush1.msra.mxu0 0.0
    %1658 = vmatprep.subr.mxu0 0.0
    %1659 = vmatpush1.msra.mxu0 0.0
    %1660 = vmatprep.subr.mxu0 0.0
    %1661 = vmatpush1.msra.mxu0 0.0
    %1662 = vmatprep.subr.mxu0 0.0
    %1663 = vmatpush1.msra.mxu0 0.0
    %1664 = vmatprep.subr.mxu0 0.0
    %1665 = vmatpush1.msra.mxu0 0.0
    %1666 = vmatprep.subr.mxu0 0.0
    %1667 = vmatpush1.msra.mxu0 0.0
    %1668 = vmatprep.subr.mxu0 0.0
    %1669 = vmatpush1.msra.mxu0 0.0
    %1670 = vmatprep.subr.mxu0 0.0
    %1671 = vmatpush1.msra.mxu0 0.0
    %1672 = vmatprep.subr.mxu0 0.0
    %1673 = vmatpush1.msra.mxu0 0.0
    %1674 = vmatprep.mubr.f32.mxu0 0.0
    %1675 = vmatmul.mubr.f32.gmra.mrb[0].mxu0 %v1518
    %v1676 = vpop.f32.mrb[0].mxu0
    %v1677 = vadd.f32 0.0, %v1676
    %v1678 = vpop.f32.mrb[0].mxu0
    %v1679 = vadd.f32 0.0, %v1678
    %1680 = vdwg.mxu0
    %v1681 = vadd.f32 %v1535, %v1606
    %v1682 = vadd.f32 %v1536, %v1608
    %v1683 = vadd.f32 %v1537, %v1677
    %v1684 = vadd.f32 %v1538, %v1679
    %v1685 = vxor.u32 %v1681, 2147483648
    %v1686 = vxor.u32 %v1682, 2147483648
    %v1687 = vxor.u32 %v1683, 2147483648
    %v1688 = vmul.f32 %v1685, 1.442695
    %v1689 = vpow.pop %v1688
    %v1690 = vmul.f32 %v1686, 1.442695
    %v1691 = vpow.pop %v1690
    %v1692 = vmul.f32 %v1687, 1.442695
    %v1693 = vpow.pop %v1692
    %v1694 = vadd.f32 %v1689, 1.0
    %v1695 = vadd.f32 %v1691, 1.0
    %v1696 = vadd.f32 %v1693, 1.0
    %v1697 = vrcp.pop %v1694
    %v1698 = vmul.f32 1.0, %v1697
    %v1699 = vrcp.pop %v1695
    %v1700 = vmul.f32 1.0, %v1699
    %v1701 = vrcp.pop %v1696
    %v1702 = vmul.f32 1.0, %v1701
    %v1703 = vtanh.pop %v1684
    %v1704 = vmul.f32 %v1700, %v1516
    %v1705 = vmul.f32 %v1698, %v1703
    %v1706 = vadd.f32 %v1704, %v1705
    %v1707 = vtanh.pop %v1706
    %v1708 = vmul.f32 %v1702, %v1707
    %v1709 = vrot.slane %v235, 7
    %v1710 = vrot.slane %v237, 7
    %v1711 = vrot.slane %v312, 7
    %v1712 = vrot.slane %v314, 7
    %v1717 = vrot.slane %v241, 6
    %v1718 = vrot.slane %v243, 6
    %v1719 = vrot.slane %v318, 6
    %v1720 = vrot.slane %v320, 6
    %v1725 = vsel %vm398, %v1709, %v1717
    %v1726 = vsel %vm398, %v1710, %v1718
    %v1727 = vsel %vm398, %v1711, %v1719
    %v1728 = vsel %vm398, %v1712, %v1720
    %1729 = vmatprep.subr.mxu0 %v323
    %1730 = vmatpush1.msra.mxu0 %v322
    %1731 = vmatprep.subr.mxu0 %v327
    %1732 = vmatpush1.msra.mxu0 %v326
    %1733 = vmatprep.subr.mxu0 %v331
    %1734 = vmatpush1.msra.mxu0 %v330
    %1735 = vmatprep.subr.mxu0 %v335
    %1736 = vmatpush1.msra.mxu0 %v334
    %1737 = vmatprep.subr.mxu0 %v339
    %1738 = vmatpush1.msra.mxu0 %v338
    %1739 = vmatprep.subr.mxu0 %v343
    %1740 = vmatpush1.msra.mxu0 %v342
    %1741 = vmatprep.subr.mxu0 %v347
    %1742 = vmatpush1.msra.mxu0 %v346
    %1743 = vmatprep.subr.mxu0 %v351
    %1744 = vmatpush1.msra.mxu0 %v350
    %1745 = vmatprep.subr.mxu0 %v355
    %1746 = vmatpush1.msra.mxu0 %v354
    %1747 = vmatprep.subr.mxu0 %v359
    %1748 = vmatpush1.msra.mxu0 %v358
    %1749 = vmatprep.subr.mxu0 %v363
    %1750 = vmatpush1.msra.mxu0 %v362
    %1751 = vmatprep.subr.mxu0 %v367
    %1752 = vmatpush1.msra.mxu0 %v366
    %1753 = vmatprep.subr.mxu0 %v371
    %1754 = vmatpush1.msra.mxu0 %v370
    %1755 = vmatprep.subr.mxu0 %v375
    %1756 = vmatpush1.msra.mxu0 %v374
    %1757 = vmatprep.subr.mxu0 %v379
    %1758 = vmatpush1.msra.mxu0 %v378
    %1759 = vmatprep.subr.mxu0 %v383
    %1760 = vmatpush1.msra.mxu0 %v382
    %1761 = vmatprep.subr.mxu0 0.0
    %1762 = vmatpush1.msra.mxu0 0.0
    %1763 = vmatprep.subr.mxu0 0.0
    %1764 = vmatpush1.msra.mxu0 0.0
    %1765 = vmatprep.subr.mxu0 0.0
    %1766 = vmatpush1.msra.mxu0 0.0
    %1767 = vmatprep.subr.mxu0 0.0
    %1768 = vmatpush1.msra.mxu0 0.0
    %1769 = vmatprep.subr.mxu0 0.0
    %1770 = vmatpush1.msra.mxu0 0.0
    %1771 = vmatprep.subr.mxu0 0.0
    %1772 = vmatpush1.msra.mxu0 0.0
    %1773 = vmatprep.subr.mxu0 0.0
    %1774 = vmatpush1.msra.mxu0 0.0
    %1775 = vmatprep.subr.mxu0 0.0
    %1776 = vmatpush1.msra.mxu0 0.0
    %1777 = vmatprep.subr.mxu0 0.0
    %1778 = vmatpush1.msra.mxu0 0.0
    %1779 = vmatprep.subr.mxu0 0.0
    %1780 = vmatpush1.msra.mxu0 0.0
    %1781 = vmatprep.subr.mxu0 0.0
    %1782 = vmatpush1.msra.mxu0 0.0
    %1783 = vmatprep.subr.mxu0 0.0
    %1784 = vmatpush1.msra.mxu0 0.0
    %1785 = vmatprep.subr.mxu0 0.0
    %1786 = vmatpush1.msra.mxu0 0.0
    %1787 = vmatprep.subr.mxu0 0.0
    %1788 = vmatpush1.msra.mxu0 0.0
    %1789 = vmatprep.subr.mxu0 0.0
    %1790 = vmatpush1.msra.mxu0 0.0
    %1791 = vmatprep.subr.mxu0 0.0
    %1792 = vmatpush1.msra.mxu0 0.0
    %1793 = vmatprep.mubr.f32.mxu0 0.0
    %1794 = vmatmul.mubr.f32.gmra.mrb[0].mxu0 %v1708
    %v1795 = vpop.f32.mrb[0].mxu0
    %v1796 = vadd.f32 0.0, %v1795
    %v1797 = vpop.f32.mrb[0].mxu0
    %v1798 = vadd.f32 0.0, %v1797
    %1799 = vdwg.mxu0
    %1800 = vmatprep.subr.mxu0 %v325
    %1801 = vmatpush1.msra.mxu0 %v324
    %1802 = vmatprep.subr.mxu0 %v329
    %1803 = vmatpush1.msra.mxu0 %v328
    %1804 = vmatprep.subr.mxu0 %v333
    %1805 = vmatpush1.msra.mxu0 %v332
    %1806 = vmatprep.subr.mxu0 %v337
    %1807 = vmatpush1.msra.mxu0 %v336
    %1808 = vmatprep.subr.mxu0 %v341
    %1809 = vmatpush1.msra.mxu0 %v340
    %1810 = vmatprep.subr.mxu0 %v345
    %1811 = vmatpush1.msra.mxu0 %v344
    %1812 = vmatprep.subr.mxu0 %v349
    %1813 = vmatpush1.msra.mxu0 %v348
    %1814 = vmatprep.subr.mxu0 %v353
    %1815 = vmatpush1.msra.mxu0 %v352
    %1816 = vmatprep.subr.mxu0 %v357
    %1817 = vmatpush1.msra.mxu0 %v356
    %1818 = vmatprep.subr.mxu0 %v361
    %1819 = vmatpush1.msra.mxu0 %v360
    %1820 = vmatprep.subr.mxu0 %v365
    %1821 = vmatpush1.msra.mxu0 %v364
    %1822 = vmatprep.subr.mxu0 %v369
    %1823 = vmatpush1.msra.mxu0 %v368
    %1824 = vmatprep.subr.mxu0 %v373
    %1825 = vmatpush1.msra.mxu0 %v372
    %1826 = vmatprep.subr.mxu0 %v377
    %1827 = vmatpush1.msra.mxu0 %v376
    %1828 = vmatprep.subr.mxu0 %v381
    %1829 = vmatpush1.msra.mxu0 %v380
    %1830 = vmatprep.subr.mxu0 %v385
    %1831 = vmatpush1.msra.mxu0 %v384
    %1832 = vmatprep.subr.mxu0 0.0
    %1833 = vmatpush1.msra.mxu0 0.0
    %1834 = vmatprep.subr.mxu0 0.0
    %1835 = vmatpush1.msra.mxu0 0.0
    %1836 = vmatprep.subr.mxu0 0.0
    %1837 = vmatpush1.msra.mxu0 0.0
    %1838 = vmatprep.subr.mxu0 0.0
    %1839 = vmatpush1.msra.mxu0 0.0
    %1840 = vmatprep.subr.mxu0 0.0
    %1841 = vmatpush1.msra.mxu0 0.0
    %1842 = vmatprep.subr.mxu0 0.0
    %1843 = vmatpush1.msra.mxu0 0.0
    %1844 = vmatprep.subr.mxu0 0.0
    %1845 = vmatpush1.msra.mxu0 0.0
    %1846 = vmatprep.subr.mxu0 0.0
    %1847 = vmatpush1.msra.mxu0 0.0
    %1848 = vmatprep.subr.mxu0 0.0
    %1849 = vmatpush1.msra.mxu0 0.0
    %1850 = vmatprep.subr.mxu0 0.0
    %1851 = vmatpush1.msra.mxu0 0.0
    %1852 = vmatprep.subr.mxu0 0.0
    %1853 = vmatpush1.msra.mxu0 0.0
    %1854 = vmatprep.subr.mxu0 0.0
    %1855 = vmatpush1.msra.mxu0 0.0
    %1856 = vmatprep.subr.mxu0 0.0
    %1857 = vmatpush1.msra.mxu0 0.0
    %1858 = vmatprep.subr.mxu0 0.0
    %1859 = vmatpush1.msra.mxu0 0.0
    %1860 = vmatprep.subr.mxu0 0.0
    %1861 = vmatpush1.msra.mxu0 0.0
    %1862 = vmatprep.subr.mxu0 0.0
    %1863 = vmatpush1.msra.mxu0 0.0
    %1864 = vmatprep.mubr.f32.mxu0 0.0
    %1865 = vmatmul.mubr.f32.gmra.mrb[0].mxu0 %v1708
    %v1866 = vpop.f32.mrb[0].mxu0
    %v1867 = vadd.f32 0.0, %v1866
    %v1868 = vpop.f32.mrb[0].mxu0
    %v1869 = vadd.f32 0.0, %v1868
    %1870 = vdwg.mxu0
    %v1871 = vadd.f32 %v1725, %v1796
    %v1872 = vadd.f32 %v1726, %v1798
    %v1873 = vadd.f32 %v1727, %v1867
    %v1874 = vadd.f32 %v1728, %v1869
    %v1875 = vxor.u32 %v1871, 2147483648
    %v1876 = vxor.u32 %v1872, 2147483648
    %v1877 = vxor.u32 %v1873, 2147483648
    %v1878 = vmul.f32 %v1875, 1.442695
    %v1879 = vpow.pop %v1878
    %v1880 = vmul.f32 %v1876, 1.442695
    %v1881 = vpow.pop %v1880
    %v1882 = vmul.f32 %v1877, 1.442695
    %v1883 = vpow.pop %v1882
    %v1884 = vadd.f32 %v1879, 1.0
    %v1885 = vadd.f32 %v1881, 1.0
    %v1886 = vadd.f32 %v1883, 1.0
    %v1887 = vrcp.pop %v1884
    %v1888 = vmul.f32 1.0, %v1887
    %v1889 = vrcp.pop %v1885
    %v1890 = vmul.f32 1.0, %v1889
    %v1891 = vrcp.pop %v1886
    %v1892 = vmul.f32 1.0, %v1891
    %v1893 = vtanh.pop %v1874
    %v1894 = vmul.f32 %v1890, %v1706
    %v1895 = vmul.f32 %v1888, %v1893
    %v1896 = vadd.f32 %v1894, %v1895
    %v1897 = vtanh.pop %v1896
    %v1898 = vmul.f32 %v1892, %v1897
    %v1899 = vlaneseq
    %v1900 = vshrl.u32 %v1899, 7
    %v1901 = vsub.s32 0, %v1900
    %v1902 = vrot.slane %v71, %v1901
    %v1903 = vmul.f32 %v1898, %v1902
    %vm1904 = vcmask 1041408
    %v1905 = vsel %vm1904, %v1903, 0.0
    %1906 = vadd.xlane.f32.xlu0 %v1905
    %v1907 = vpop.xlane.xlu0 %1906
    %v1908 = vlaneseq
    %v1909 = vshrl.u32 %v1908, 7
    %v1910 = vsub.s32 0, %v1909
    %v1911 = vrot.slane %v72, %v1910
    %v1912 = vadd.f32 %v1907, %v1911
    %v1913 = vadd.f32 %v1912, 1e-06
    %v1914 = vxor.u32 %v1913, 2147483648
    %v1915 = vmul.f32 %v1914, 1.442695
    %v1916 = vpow.pop %v1915
    %v1917 = vadd.f32 %v1916, 1.0
    %v1918 = vrcp.pop %v1917
    %v1919 = vmul.f32 1.0, %v1918
    %vm1920 = vcmask 1024
    %1921 = vst.msk [vmem:[%s4] sm:$0x3] %vm1920, %v1919
    // Predicated region
    $region34: #{lstm_model_forward.1} parent=1 // pred_check
      _
    $region35: #{lstm_model_forward.1} parent=1 // pred_check_branch
      %1923 = sbr.rel (0) target = $region37
    $region36: #{lstm_model_forward.1} parent=1 // pred_region
      _
    $region37: #{lstm_model_forward.1} parent=1 // pred_fallthru
      _
    // Predicated region
    $region38: #{lstm_model_forward.1} parent=1 // pred_check
      _
    $region39: #{lstm_model_forward.1} parent=1 // pred_check_branch
      %1925 = sbr.rel (0) target = $region41
    $region40: #{lstm_model_forward.1} parent=1 // pred_region
      _
    $region41: #{lstm_model_forward.1} parent=1 // pred_fallthru
      _
    %1926 = vsyncpa [#allocation3], 1
    %1927 = vsyncpa [#allocation5], 1
    %1928 = vsyncpa [#allocation8], 1

</llo_original>
